<compile_context>
chip_gen: v6e
topology: v6e:2x2x1
jax: 0.10.0
libtpu: 0.0.40
codegen_flags: <defaults>
</compile_context>

<pallas_src>
import jax
import jax.numpy as jnp
import numpy as np
from jax import lax
from jax.experimental import pallas as pl
from jax.experimental.pallas import tpu as pltpu


# ----------------------------------------------------------------------------
# Fused Pallas kernel: all LSTM layers + final FC in one invocation
# ----------------------------------------------------------------------------
def _make_fused_lstm_fc_kernel(num_layers, seq_len, batch, hidden):
    T, B, H = seq_len, batch, hidden

    def kernel(*refs):
        # refs = [x2d, (w_ih, w_hh, b) * num_layers, fc_w, fc_b, out, scratch...]
        x_ref = refs[0]
        layer_refs = refs[1:1 + 3 * num_layers]
        fc_w_ref = refs[1 + 3 * num_layers]
        fc_b_ref = refs[2 + 3 * num_layers]
        out_ref = refs[3 + 3 * num_layers]
        proj_scr, hseq_scr = refs[4 + 3 * num_layers:]

        h = None
        for layer in range(num_layers):
            # Load the layer weights once (values, not refs) so the recurrent
            # matmul reuses the same staged RHS across all T steps.
            # TODO(synk): explicit MXU staging via pltpu.matmul_push_rhs /
            # matmul_acc_lhs (and v7x MRB accumulate of proj_t) is left to the
            # compiler; at H=32 the win is small and the API is fragile.
            w_ih = layer_refs[3 * layer + 0][...]
            w_hh = layer_refs[3 * layer + 1][...]
            b = layer_refs[3 * layer + 2][...]

            # ---- Phase 1 (off the serial path): hoisted input projection for
            # the whole sequence as ONE (T*B, D_in) @ (D_in, 4H) MXU matmul,
            # bias folded in once.  Layer 0 reads the batch-major input rows;
            # deeper layers read the previous layer's time-major VMEM-resident
            # h-sequence.
            inp = x_ref[...] if layer == 0 else hseq_scr[...]
            proj_scr[...] = (
                jnp.dot(inp, w_ih, preferred_element_type=jnp.float32) + b
            )

            # ---- Phase 2: the true time recurrence.  Fully-unrolled static
            # loop; h / c are vreg-resident Python locals (no VMEM carries).
            h = jnp.zeros((B, H), jnp.float32)
            c = jnp.zeros((B, H), jnp.float32)
            for t in range(T):
                if layer == 0:
                    # Layer-0 projection rows are batch-major (row = b*T + t):
                    # gather timestep t with a static strided sublane slice.
                    p_t = proj_scr[pl.ds(t, B, stride=T), :]
                else:
                    # Deeper layers' projections are time-major: contiguous slab.
                    p_t = proj_scr[t * B:(t + 1) * B, :]

                gates = p_t + jnp.dot(h, w_hh, preferred_element_type=jnp.float32)

                # One full-width sigmoid (EUP) instead of 3 quarter-width ones;
                # per-gate alignment is cheap lane work on XLU/VPU slots.
                sig = jax.nn.sigmoid(gates)
                i_g = sig[:, 0 * H:1 * H]
                f_g = sig[:, 1 * H:2 * H]
                o_g = sig[:, 3 * H:4 * H]
                g_g = jnp.tanh(gates[:, 2 * H:3 * H])

                c = f_g * c + i_g * g_g
                h = o_g * jnp.tanh(c)

                if layer < num_layers - 1:
                    # Next layer's input; stays in VMEM, never touches HBM.
                    hseq_scr[t * B:(t + 1) * B, :] = h

        # ---- Final nn.Linear(hidden, 1) on the last timestep of the last
        # layer: VPU broadcast-multiply + lane reduction (no N=1 MXU matmul).
        # The only HBM write is this (B, 1) result.
        out_ref[...] = (
            jnp.sum(h * fc_w_ref[...], axis=-1, keepdims=True) + fc_b_ref[...]
        )

    return kernel


# ----------------------------------------------------------------------------
# Wrapper
# ----------------------------------------------------------------------------
@jax.jit
def lstm_pv_forward(x_btd, params):
    """Full forward: x_btd is PyTorch-style batch_first (B, T, D) -> (B, 1)."""
    B, T, D = x_btd.shape
    layers = params["lstm"]
    num_layers = len(layers)
    H = layers[0]["w_hh"].shape[0]

    # Row slabs inside the kernel assume whole sublane tiles.
    assert B % 8 == 0, "batch must be a multiple of the 8-sublane tile"

    # No transpose: a free metadata reshape to batch-major rows (row = b*T + t);
    # the kernel gathers timestep slabs with a static strided sublane slice.
    x2d = x_btd.astype(jnp.float32).reshape(B * T, D)

    args = [x2d]
    for layer in layers:
        args += [layer["w_ih"], layer["w_hh"], layer["b"]]
    args += [params["fc_w"], params["fc_b"]]

    # All operands are 2-D and loaded as full blocks (no grid).
    in_specs = [pl.BlockSpec(a.shape, lambda: (0, 0)) for a in args]

    # TODO(synk): nn.LSTM inter-layer dropout (training-mode only) is not
    # applied; this reproduces eval/inference forward semantics.
    return pl.pallas_call(
        _make_fused_lstm_fc_kernel(num_layers, T, B, H),
        out_shape=jax.ShapeDtypeStruct((B, 1), jnp.float32),
        in_specs=in_specs,
        out_specs=pl.BlockSpec((B, 1), lambda: (0, 0)),
        scratch_shapes=[
            pltpu.VMEM((T * B, 4 * H), jnp.float32),  # hoisted gate projections
            pltpu.VMEM((T * B, H), jnp.float32),      # current layer's h-sequence
        ],
        # Total VMEM footprint (inputs + weights + scratch) ~100 KiB — far
        # inside the scoped default on every generation, including v7x.
    )(*args)


# ----------------------------------------------------------------------------
# Parameter init (deterministic, mimics PyTorch U(-1/sqrt(H), 1/sqrt(H)))
# ----------------------------------------------------------------------------
def init_params(key, input_size, hidden_size, num_layers):
    k = 1.0 / np.sqrt(hidden_size)
    layers = []
    for li in range(num_layers):
        d_in = input_size if li == 0 else hidden_size
        key, k1, k2, k3, k4 = jax.random.split(key, 5)
        # PyTorch stores (4H, D)/(4H, H); we keep the transposed layout.
        w_ih = jax.random.uniform(k1, (d_in, 4 * hidden_size), jnp.float32, -k, k)
        w_hh = jax.random.uniform(k2, (hidden_size, 4 * hidden_size), jnp.float32, -k, k)
        b_ih = jax.random.uniform(k3, (4 * hidden_size,), jnp.float32, -k, k)
        b_hh = jax.random.uniform(k4, (4 * hidden_size,), jnp.float32, -k, k)
        layers.append({"w_ih": w_ih, "w_hh": w_hh, "b": (b_ih + b_hh)[None, :]})
    key, k5, k6 = jax.random.split(key, 3)
    fc_w = jax.random.uniform(k5, (1, hidden_size), jnp.float32, -k, k)  # (1, H) row
    fc_b = jax.random.uniform(k6, (1, 1), jnp.float32, -k, k)
    return {"lstm": layers, "fc_w": fc_w, "fc_b": fc_b}


# ----------------------------------------------------------------------------
# Pure-JAX reference (lax.scan) for correctness checking
# ----------------------------------------------------------------------------
def reference_forward(x_btd, params):
    x = jnp.transpose(x_btd, (1, 0, 2)).astype(jnp.float32)   # (T, B, D)
    for layer in params["lstm"]:
        H = layer["w_hh"].shape[0]
        B = x.shape[1]

        def step(carry, x_t, layer=layer, H=H):
            h, c = carry
            gates = x_t @ layer["w_ih"] + h @ layer["w_hh"] + layer["b"]
            i_g = jax.nn.sigmoid(gates[:, 0 * H:1 * H])
            f_g = jax.nn.sigmoid(gates[:, 1 * H:2 * H])
            g_g = jnp.tanh(gates[:, 2 * H:3 * H])
            o_g = jax.nn.sigmoid(gates[:, 3 * H:4 * H])
            c_new = f_g * c + i_g * g_g
            h_new = o_g * jnp.tanh(c_new)
            return (h_new, c_new), h_new

        init = (jnp.zeros((B, H), jnp.float32), jnp.zeros((B, H), jnp.float32))
        _, x = lax.scan(step, init, x)
    return x[-1] @ params["fc_w"].T + params["fc_b"]


# ----------------------------------------------------------------------------
if __name__ == "__main__":
    input_size = 16
    hidden_size = 32
    num_layers = 2
    dropout = 0.1          # inactive in eval-mode forward
    batch = 8
    seq = 8

    key = jax.random.PRNGKey(0)
    key, pk, xk = jax.random.split(key, 3)
    params = init_params(pk, input_size, hidden_size, num_layers)
    x = jax.random.normal(xk, (batch, seq, input_size), jnp.float32)

    out = lstm_pv_forward(x, params)
    out = jax.block_until_ready(out)
    assert out.shape == (batch, 1), out.shape

    ref = jax.block_until_ready(reference_forward(x, params))
    np.testing.assert_allclose(np.asarray(out), np.asarray(ref), atol=1e-5, rtol=1e-5)

    print("KERNEL_OK")
</pallas_src>

<mosaic_0001>
module attributes {stable_mosaic.version = 11 : i64} {
  func.func @kernel(%arg0: memref<64x16xf32, #tpu.memory_space<vmem>>, %arg1: memref<16x128xf32, #tpu.memory_space<vmem>>, %arg2: memref<32x128xf32, #tpu.memory_space<vmem>>, %arg3: memref<1x128xf32, #tpu.memory_space<vmem>>, %arg4: memref<32x128xf32, #tpu.memory_space<vmem>>, %arg5: memref<32x128xf32, #tpu.memory_space<vmem>>, %arg6: memref<1x128xf32, #tpu.memory_space<vmem>>, %arg7: memref<1x32xf32, #tpu.memory_space<vmem>>, %arg8: memref<1x1xf32, #tpu.memory_space<vmem>>, %arg9: memref<8x1xf32, #tpu.memory_space<vmem>>, %arg10: memref<64x128xf32, #tpu.memory_space<vmem>>, %arg11: memref<64x32xf32, #tpu.memory_space<vmem>>) attributes {dimension_semantics = [], scalar_prefetch = 0 : i64, scratch_operands = 2 : i64, tpu.core_type = #tpu.core_type<tc>} {
    %c0 = arith.constant 0 : index
    %c0_0 = arith.constant 0 : index
    %0 = vector.load %arg1[%c0, %c0_0] : memref<16x128xf32, #tpu.memory_space<vmem>>, vector<16x128xf32>
    %c0_1 = arith.constant 0 : index
    %c0_2 = arith.constant 0 : index
    %1 = vector.load %arg2[%c0_1, %c0_2] : memref<32x128xf32, #tpu.memory_space<vmem>>, vector<32x128xf32>
    %c0_3 = arith.constant 0 : index
    %c0_4 = arith.constant 0 : index
    %2 = vector.load %arg3[%c0_3, %c0_4] : memref<1x128xf32, #tpu.memory_space<vmem>>, vector<1x128xf32>
    %c0_5 = arith.constant 0 : index
    %c0_6 = arith.constant 0 : index
    %3 = vector.load %arg0[%c0_5, %c0_6] : memref<64x16xf32, #tpu.memory_space<vmem>>, vector<64x16xf32>
    %cst = arith.constant dense<0.000000e+00> : vector<64x128xf32>
    %4 = tpu.matmul %3, %0, %cst {dimension_numbers = #tpu.dot_dimension_numbers<[1], [0], [0], [1], [0, 0, 1, 1], [], []>} : vector<64x16xf32>, vector<16x128xf32>, vector<64x128xf32> -> vector<64x128xf32>
    %5 = vector.broadcast %2 : vector<1x128xf32> to vector<64x128xf32>
    %6 = arith.addf %4, %5 : vector<64x128xf32>
    %c0_7 = arith.constant 0 : index
    %c0_8 = arith.constant 0 : index
    %7 = vector.load %arg10[%c0_7, %c0_8] : memref<64x128xf32, #tpu.memory_space<vmem>>, vector<64x128xf32>
    tpu.vector_store %arg10[%c0_7, %c0_8], %6 {strides = array<i32>} : memref<64x128xf32, #tpu.memory_space<vmem>>, vector<64x128xf32>,
    %cst_9 = arith.constant 0.000000e+00 : f32
    %8 = vector.broadcast %cst_9 : f32 to vector<8x32xf32>
    %cst_10 = arith.constant 0.000000e+00 : f32
    %9 = vector.broadcast %cst_10 : f32 to vector<8x32xf32>
    %c0_11 = arith.constant 0 : index
    %c0_12 = arith.constant 0 : index
    %10 = tpu.strided_load %arg10[%c0_11, %c0_12] {strides = array<i32: 8, 1>} : memref<64x128xf32, #tpu.memory_space<vmem>>, vector<8x128xf32>
    %cst_13 = arith.constant dense<0.000000e+00> : vector<8x128xf32>
    %11 = tpu.matmul %8, %1, %cst_13 {dimension_numbers = #tpu.dot_dimension_numbers<[1], [0], [0], [1], [0, 0, 1, 1], [], []>} : vector<8x32xf32>, vector<32x128xf32>, vector<8x128xf32> -> vector<8x128xf32>
    %12 = arith.addf %10, %11 : vector<8x128xf32>
    %13 = arith.negf %12 : vector<8x128xf32>
    %14 = math.exp %13 : vector<8x128xf32>
    %cst_14 = arith.constant 1.000000e+00 : f32
    %15 = vector.broadcast %cst_14 : f32 to vector<8x128xf32>
    %16 = arith.addf %15, %14 : vector<8x128xf32>
    %17 = arith.divf %15, %16 : vector<8x128xf32>
    %18 = vector.extract_strided_slice %17 {offsets = [0, 0], sizes = [8, 32], strides = [1, 1]} : vector<8x128xf32> to vector<8x32xf32>
    %19 = vector.extract_strided_slice %17 {offsets = [0, 32], sizes = [8, 32], strides = [1, 1]} : vector<8x128xf32> to vector<8x32xf32>
    %20 = vector.extract_strided_slice %17 {offsets = [0, 96], sizes = [8, 32], strides = [1, 1]} : vector<8x128xf32> to vector<8x32xf32>
    %21 = vector.extract_strided_slice %12 {offsets = [0, 64], sizes = [8, 32], strides = [1, 1]} : vector<8x128xf32> to vector<8x32xf32>
    %22 = math.tanh %21 : vector<8x32xf32>
    %23 = arith.mulf %19, %9 : vector<8x32xf32>
    %24 = arith.mulf %18, %22 : vector<8x32xf32>
    %25 = arith.addf %23, %24 : vector<8x32xf32>
    %26 = math.tanh %25 : vector<8x32xf32>
    %27 = arith.mulf %20, %26 : vector<8x32xf32>
    %c0_15 = arith.constant 0 : index
    %c0_16 = arith.constant 0 : index
    %28 = vector.load %arg11[%c0_15, %c0_16] : memref<64x32xf32, #tpu.memory_space<vmem>>, vector<8x32xf32>
    tpu.vector_store %arg11[%c0_15, %c0_16], %27 {strides = array<i32>} : memref<64x32xf32, #tpu.memory_space<vmem>>, vector<8x32xf32>,
    %c1 = arith.constant 1 : index
    %c0_17 = arith.constant 0 : index
    %29 = tpu.strided_load %arg10[%c1, %c0_17] {strides = array<i32: 8, 1>} : memref<64x128xf32, #tpu.memory_space<vmem>>, vector<8x128xf32>
    %cst_18 = arith.constant dense<0.000000e+00> : vector<8x128xf32>
    %30 = tpu.matmul %27, %1, %cst_18 {dimension_numbers = #tpu.dot_dimension_numbers<[1], [0], [0], [1], [0, 0, 1, 1], [], []>} : vector<8x32xf32>, vector<32x128xf32>, vector<8x128xf32> -> vector<8x128xf32>
    %31 = arith.addf %29, %30 : vector<8x128xf32>
    %32 = arith.negf %31 : vector<8x128xf32>
    %33 = math.exp %32 : vector<8x128xf32>
    %cst_19 = arith.constant 1.000000e+00 : f32
    %34 = vector.broadcast %cst_19 : f32 to vector<8x128xf32>
    %35 = arith.addf %34, %33 : vector<8x128xf32>
    %36 = arith.divf %34, %35 : vector<8x128xf32>
    %37 = vector.extract_strided_slice %36 {offsets = [0, 0], sizes = [8, 32], strides = [1, 1]} : vector<8x128xf32> to vector<8x32xf32>
    %38 = vector.extract_strided_slice %36 {offsets = [0, 32], sizes = [8, 32], strides = [1, 1]} : vector<8x128xf32> to vector<8x32xf32>
    %39 = vector.extract_strided_slice %36 {offsets = [0, 96], sizes = [8, 32], strides = [1, 1]} : vector<8x128xf32> to vector<8x32xf32>
    %40 = vector.extract_strided_slice %31 {offsets = [0, 64], sizes = [8, 32], strides = [1, 1]} : vector<8x128xf32> to vector<8x32xf32>
    %41 = math.tanh %40 : vector<8x32xf32>
    %42 = arith.mulf %38, %25 : vector<8x32xf32>
    %43 = arith.mulf %37, %41 : vector<8x32xf32>
    %44 = arith.addf %42, %43 : vector<8x32xf32>
    %45 = math.tanh %44 : vector<8x32xf32>
    %46 = arith.mulf %39, %45 : vector<8x32xf32>
    %c8 = arith.constant 8 : index
    %c0_20 = arith.constant 0 : index
    %47 = vector.load %arg11[%c8, %c0_20] : memref<64x32xf32, #tpu.memory_space<vmem>>, vector<8x32xf32>
    tpu.vector_store %arg11[%c8, %c0_20], %46 {strides = array<i32>} : memref<64x32xf32, #tpu.memory_space<vmem>>, vector<8x32xf32>,
    %c2 = arith.constant 2 : index
    %c0_21 = arith.constant 0 : index
    %48 = tpu.strided_load %arg10[%c2, %c0_21] {strides = array<i32: 8, 1>} : memref<64x128xf32, #tpu.memory_space<vmem>>, vector<8x128xf32>
    %cst_22 = arith.constant dense<0.000000e+00> : vector<8x128xf32>
    %49 = tpu.matmul %46, %1, %cst_22 {dimension_numbers = #tpu.dot_dimension_numbers<[1], [0], [0], [1], [0, 0, 1, 1], [], []>} : vector<8x32xf32>, vector<32x128xf32>, vector<8x128xf32> -> vector<8x128xf32>
    %50 = arith.addf %48, %49 : vector<8x128xf32>
    %51 = arith.negf %50 : vector<8x128xf32>
    %52 = math.exp %51 : vector<8x128xf32>
    %cst_23 = arith.constant 1.000000e+00 : f32
    %53 = vector.broadcast %cst_23 : f32 to vector<8x128xf32>
    %54 = arith.addf %53, %52 : vector<8x128xf32>
    %55 = arith.divf %53, %54 : vector<8x128xf32>
    %56 = vector.extract_strided_slice %55 {offsets = [0, 0], sizes = [8, 32], strides = [1, 1]} : vector<8x128xf32> to vector<8x32xf32>
    %57 = vector.extract_strided_slice %55 {offsets = [0, 32], sizes = [8, 32], strides = [1, 1]} : vector<8x128xf32> to vector<8x32xf32>
    %58 = vector.extract_strided_slice %55 {offsets = [0, 96], sizes = [8, 32], strides = [1, 1]} : vector<8x128xf32> to vector<8x32xf32>
    %59 = vector.extract_strided_slice %50 {offsets = [0, 64], sizes = [8, 32], strides = [1, 1]} : vector<8x128xf32> to vector<8x32xf32>
    %60 = math.tanh %59 : vector<8x32xf32>
    %61 = arith.mulf %57, %44 : vector<8x32xf32>
    %62 = arith.mulf %56, %60 : vector<8x32xf32>
    %63 = arith.addf %61, %62 : vector<8x32xf32>
    %64 = math.tanh %63 : vector<8x32xf32>
    %65 = arith.mulf %58, %64 : vector<8x32xf32>
    %c16 = arith.constant 16 : index
    %c0_24 = arith.constant 0 : index
    %66 = vector.load %arg11[%c16, %c0_24] : memref<64x32xf32, #tpu.memory_space<vmem>>, vector<8x32xf32>
    tpu.vector_store %arg11[%c16, %c0_24], %65 {strides = array<i32>} : memref<64x32xf32, #tpu.memory_space<vmem>>, vector<8x32xf32>,
    %c3 = arith.constant 3 : index
    %c0_25 = arith.constant 0 : index
    %67 = tpu.strided_load %arg10[%c3, %c0_25] {strides = array<i32: 8, 1>} : memref<64x128xf32, #tpu.memory_space<vmem>>, vector<8x128xf32>
    %cst_26 = arith.constant dense<0.000000e+00> : vector<8x128xf32>
    %68 = tpu.matmul %65, %1, %cst_26 {dimension_numbers = #tpu.dot_dimension_numbers<[1], [0], [0], [1], [0, 0, 1, 1], [], []>} : vector<8x32xf32>, vector<32x128xf32>, vector<8x128xf32> -> vector<8x128xf32>
    %69 = arith.addf %67, %68 : vector<8x128xf32>
    %70 = arith.negf %69 : vector<8x128xf32>
    %71 = math.exp %70 : vector<8x128xf32>
    %cst_27 = arith.constant 1.000000e+00 : f32
    %72 = vector.broadcast %cst_27 : f32 to vector<8x128xf32>
    %73 = arith.addf %72, %71 : vector<8x128xf32>
    %74 = arith.divf %72, %73 : vector<8x128xf32>
    %75 = vector.extract_strided_slice %74 {offsets = [0, 0], sizes = [8, 32], strides = [1, 1]} : vector<8x128xf32> to vector<8x32xf32>
    %76 = vector.extract_strided_slice %74 {offsets = [0, 32], sizes = [8, 32], strides = [1, 1]} : vector<8x128xf32> to vector<8x32xf32>
    %77 = vector.extract_strided_slice %74 {offsets = [0, 96], sizes = [8, 32], strides = [1, 1]} : vector<8x128xf32> to vector<8x32xf32>
    %78 = vector.extract_strided_slice %69 {offsets = [0, 64], sizes = [8, 32], strides = [1, 1]} : vector<8x128xf32> to vector<8x32xf32>
    %79 = math.tanh %78 : vector<8x32xf32>
    %80 = arith.mulf %76, %63 : vector<8x32xf32>
    %81 = arith.mulf %75, %79 : vector<8x32xf32>
    %82 = arith.addf %80, %81 : vector<8x32xf32>
    %83 = math.tanh %82 : vector<8x32xf32>
    %84 = arith.mulf %77, %83 : vector<8x32xf32>
    %c24 = arith.constant 24 : index
    %c0_28 = arith.constant 0 : index
    %85 = vector.load %arg11[%c24, %c0_28] : memref<64x32xf32, #tpu.memory_space<vmem>>, vector<8x32xf32>
    tpu.vector_store %arg11[%c24, %c0_28], %84 {strides = array<i32>} : memref<64x32xf32, #tpu.memory_space<vmem>>, vector<8x32xf32>,
    %c4 = arith.constant 4 : index
    %c0_29 = arith.constant 0 : index
    %86 = tpu.strided_load %arg10[%c4, %c0_29] {strides = array<i32: 8, 1>} : memref<64x128xf32, #tpu.memory_space<vmem>>, vector<8x128xf32>
    %cst_30 = arith.constant dense<0.000000e+00> : vector<8x128xf32>
    %87 = tpu.matmul %84, %1, %cst_30 {dimension_numbers = #tpu.dot_dimension_numbers<[1], [0], [0], [1], [0, 0, 1, 1], [], []>} : vector<8x32xf32>, vector<32x128xf32>, vector<8x128xf32> -> vector<8x128xf32>
    %88 = arith.addf %86, %87 : vector<8x128xf32>
    %89 = arith.negf %88 : vector<8x128xf32>
    %90 = math.exp %89 : vector<8x128xf32>
    %cst_31 = arith.constant 1.000000e+00 : f32
    %91 = vector.broadcast %cst_31 : f32 to vector<8x128xf32>
    %92 = arith.addf %91, %90 : vector<8x128xf32>
    %93 = arith.divf %91, %92 : vector<8x128xf32>
    %94 = vector.extract_strided_slice %93 {offsets = [0, 0], sizes = [8, 32], strides = [1, 1]} : vector<8x128xf32> to vector<8x32xf32>
    %95 = vector.extract_strided_slice %93 {offsets = [0, 32], sizes = [8, 32], strides = [1, 1]} : vector<8x128xf32> to vector<8x32xf32>
    %96 = vector.extract_strided_slice %93 {offsets = [0, 96], sizes = [8, 32], strides = [1, 1]} : vector<8x128xf32> to vector<8x32xf32>
    %97 = vector.extract_strided_slice %88 {offsets = [0, 64], sizes = [8, 32], strides = [1, 1]} : vector<8x128xf32> to vector<8x32xf32>
    %98 = math.tanh %97 : vector<8x32xf32>
    %99 = arith.mulf %95, %82 : vector<8x32xf32>
    %100 = arith.mulf %94, %98 : vector<8x32xf32>
    %101 = arith.addf %99, %100 : vector<8x32xf32>
    %102 = math.tanh %101 : vector<8x32xf32>
    %103 = arith.mulf %96, %102 : vector<8x32xf32>
    %c32 = arith.constant 32 : index
    %c0_32 = arith.constant 0 : index
    %104 = vector.load %arg11[%c32, %c0_32] : memref<64x32xf32, #tpu.memory_space<vmem>>, vector<8x32xf32>
    tpu.vector_store %arg11[%c32, %c0_32], %103 {strides = array<i32>} : memref<64x32xf32, #tpu.memory_space<vmem>>, vector<8x32xf32>,
    %c5 = arith.constant 5 : index
    %c0_33 = arith.constant 0 : index
    %105 = tpu.strided_load %arg10[%c5, %c0_33] {strides = array<i32: 8, 1>} : memref<64x128xf32, #tpu.memory_space<vmem>>, vector<8x128xf32>
    %cst_34 = arith.constant dense<0.000000e+00> : vector<8x128xf32>
    %106 = tpu.matmul %103, %1, %cst_34 {dimension_numbers = #tpu.dot_dimension_numbers<[1], [0], [0], [1], [0, 0, 1, 1], [], []>} : vector<8x32xf32>, vector<32x128xf32>, vector<8x128xf32> -> vector<8x128xf32>
    %107 = arith.addf %105, %106 : vector<8x128xf32>
    %108 = arith.negf %107 : vector<8x128xf32>
    %109 = math.exp %108 : vector<8x128xf32>
    %cst_35 = arith.constant 1.000000e+00 : f32
    %110 = vector.broadcast %cst_35 : f32 to vector<8x128xf32>
    %111 = arith.addf %110, %109 : vector<8x128xf32>
    %112 = arith.divf %110, %111 : vector<8x128xf32>
    %113 = vector.extract_strided_slice %112 {offsets = [0, 0], sizes = [8, 32], strides = [1, 1]} : vector<8x128xf32> to vector<8x32xf32>
    %114 = vector.extract_strided_slice %112 {offsets = [0, 32], sizes = [8, 32], strides = [1, 1]} : vector<8x128xf32> to vector<8x32xf32>
    %115 = vector.extract_strided_slice %112 {offsets = [0, 96], sizes = [8, 32], strides = [1, 1]} : vector<8x128xf32> to vector<8x32xf32>
    %116 = vector.extract_strided_slice %107 {offsets = [0, 64], sizes = [8, 32], strides = [1, 1]} : vector<8x128xf32> to vector<8x32xf32>
    %117 = math.tanh %116 : vector<8x32xf32>
    %118 = arith.mulf %114, %101 : vector<8x32xf32>
    %119 = arith.mulf %113, %117 : vector<8x32xf32>
    %120 = arith.addf %118, %119 : vector<8x32xf32>
    %121 = math.tanh %120 : vector<8x32xf32>
    %122 = arith.mulf %115, %121 : vector<8x32xf32>
    %c40 = arith.constant 40 : index
    %c0_36 = arith.constant 0 : index
    %123 = vector.load %arg11[%c40, %c0_36] : memref<64x32xf32, #tpu.memory_space<vmem>>, vector<8x32xf32>
    tpu.vector_store %arg11[%c40, %c0_36], %122 {strides = array<i32>} : memref<64x32xf32, #tpu.memory_space<vmem>>, vector<8x32xf32>,
    %c6 = arith.constant 6 : index
    %c0_37 = arith.constant 0 : index
    %124 = tpu.strided_load %arg10[%c6, %c0_37] {strides = array<i32: 8, 1>} : memref<64x128xf32, #tpu.memory_space<vmem>>, vector<8x128xf32>
    %cst_38 = arith.constant dense<0.000000e+00> : vector<8x128xf32>
    %125 = tpu.matmul %122, %1, %cst_38 {dimension_numbers = #tpu.dot_dimension_numbers<[1], [0], [0], [1], [0, 0, 1, 1], [], []>} : vector<8x32xf32>, vector<32x128xf32>, vector<8x128xf32> -> vector<8x128xf32>
    %126 = arith.addf %124, %125 : vector<8x128xf32>
    %127 = arith.negf %126 : vector<8x128xf32>
    %128 = math.exp %127 : vector<8x128xf32>
    %cst_39 = arith.constant 1.000000e+00 : f32
    %129 = vector.broadcast %cst_39 : f32 to vector<8x128xf32>
    %130 = arith.addf %129, %128 : vector<8x128xf32>
    %131 = arith.divf %129, %130 : vector<8x128xf32>
    %132 = vector.extract_strided_slice %131 {offsets = [0, 0], sizes = [8, 32], strides = [1, 1]} : vector<8x128xf32> to vector<8x32xf32>
    %133 = vector.extract_strided_slice %131 {offsets = [0, 32], sizes = [8, 32], strides = [1, 1]} : vector<8x128xf32> to vector<8x32xf32>
    %134 = vector.extract_strided_slice %131 {offsets = [0, 96], sizes = [8, 32], strides = [1, 1]} : vector<8x128xf32> to vector<8x32xf32>
    %135 = vector.extract_strided_slice %126 {offsets = [0, 64], sizes = [8, 32], strides = [1, 1]} : vector<8x128xf32> to vector<8x32xf32>
    %136 = math.tanh %135 : vector<8x32xf32>
    %137 = arith.mulf %133, %120 : vector<8x32xf32>
    %138 = arith.mulf %132, %136 : vector<8x32xf32>
    %139 = arith.addf %137, %138 : vector<8x32xf32>
    %140 = math.tanh %139 : vector<8x32xf32>
    %141 = arith.mulf %134, %140 : vector<8x32xf32>
    %c48 = arith.constant 48 : index
    %c0_40 = arith.constant 0 : index
    %142 = vector.load %arg11[%c48, %c0_40] : memref<64x32xf32, #tpu.memory_space<vmem>>, vector<8x32xf32>
    tpu.vector_store %arg11[%c48, %c0_40], %141 {strides = array<i32>} : memref<64x32xf32, #tpu.memory_space<vmem>>, vector<8x32xf32>,
    %c7 = arith.constant 7 : index
    %c0_41 = arith.constant 0 : index
    %143 = tpu.strided_load %arg10[%c7, %c0_41] {strides = array<i32: 8, 1>} : memref<64x128xf32, #tpu.memory_space<vmem>>, vector<8x128xf32>
    %cst_42 = arith.constant dense<0.000000e+00> : vector<8x128xf32>
    %144 = tpu.matmul %141, %1, %cst_42 {dimension_numbers = #tpu.dot_dimension_numbers<[1], [0], [0], [1], [0, 0, 1, 1], [], []>} : vector<8x32xf32>, vector<32x128xf32>, vector<8x128xf32> -> vector<8x128xf32>
    %145 = arith.addf %143, %144 : vector<8x128xf32>
    %146 = arith.negf %145 : vector<8x128xf32>
    %147 = math.exp %146 : vector<8x128xf32>
    %cst_43 = arith.constant 1.000000e+00 : f32
    %148 = vector.broadcast %cst_43 : f32 to vector<8x128xf32>
    %149 = arith.addf %148, %147 : vector<8x128xf32>
    %150 = arith.divf %148, %149 : vector<8x128xf32>
    %151 = vector.extract_strided_slice %150 {offsets = [0, 0], sizes = [8, 32], strides = [1, 1]} : vector<8x128xf32> to vector<8x32xf32>
    %152 = vector.extract_strided_slice %150 {offsets = [0, 32], sizes = [8, 32], strides = [1, 1]} : vector<8x128xf32> to vector<8x32xf32>
    %153 = vector.extract_strided_slice %150 {offsets = [0, 96], sizes = [8, 32], strides = [1, 1]} : vector<8x128xf32> to vector<8x32xf32>
    %154 = vector.extract_strided_slice %145 {offsets = [0, 64], sizes = [8, 32], strides = [1, 1]} : vector<8x128xf32> to vector<8x32xf32>
    %155 = math.tanh %154 : vector<8x32xf32>
    %156 = arith.mulf %152, %139 : vector<8x32xf32>
    %157 = arith.mulf %151, %155 : vector<8x32xf32>
    %158 = arith.addf %156, %157 : vector<8x32xf32>
    %159 = math.tanh %158 : vector<8x32xf32>
    %160 = arith.mulf %153, %159 : vector<8x32xf32>
    %c56 = arith.constant 56 : index
    %c0_44 = arith.constant 0 : index
    %161 = vector.load %arg11[%c56, %c0_44] : memref<64x32xf32, #tpu.memory_space<vmem>>, vector<8x32xf32>
    tpu.vector_store %arg11[%c56, %c0_44], %160 {strides = array<i32>} : memref<64x32xf32, #tpu.memory_space<vmem>>, vector<8x32xf32>,
    %c0_45 = arith.constant 0 : index
    %c0_46 = arith.constant 0 : index
    %162 = vector.load %arg4[%c0_45, %c0_46] : memref<32x128xf32, #tpu.memory_space<vmem>>, vector<32x128xf32>
    %c0_47 = arith.constant 0 : index
    %c0_48 = arith.constant 0 : index
    %163 = vector.load %arg5[%c0_47, %c0_48] : memref<32x128xf32, #tpu.memory_space<vmem>>, vector<32x128xf32>
    %c0_49 = arith.constant 0 : index
    %c0_50 = arith.constant 0 : index
    %164 = vector.load %arg6[%c0_49, %c0_50] : memref<1x128xf32, #tpu.memory_space<vmem>>, vector<1x128xf32>
    %c0_51 = arith.constant 0 : index
    %c0_52 = arith.constant 0 : index
    %165 = vector.load %arg11[%c0_51, %c0_52] : memref<64x32xf32, #tpu.memory_space<vmem>>, vector<64x32xf32>
    %cst_53 = arith.constant dense<0.000000e+00> : vector<64x128xf32>
    %166 = tpu.matmul %165, %162, %cst_53 {dimension_numbers = #tpu.dot_dimension_numbers<[1], [0], [0], [1], [0, 0, 1, 1], [], []>} : vector<64x32xf32>, vector<32x128xf32>, vector<64x128xf32> -> vector<64x128xf32>
    %167 = vector.broadcast %164 : vector<1x128xf32> to vector<64x128xf32>
    %168 = arith.addf %166, %167 : vector<64x128xf32>
    %c0_54 = arith.constant 0 : index
    %c0_55 = arith.constant 0 : index
    %169 = vector.load %arg10[%c0_54, %c0_55] : memref<64x128xf32, #tpu.memory_space<vmem>>, vector<64x128xf32>
    tpu.vector_store %arg10[%c0_54, %c0_55], %168 {strides = array<i32>} : memref<64x128xf32, #tpu.memory_space<vmem>>, vector<64x128xf32>,
    %cst_56 = arith.constant 0.000000e+00 : f32
    %170 = vector.broadcast %cst_56 : f32 to vector<8x32xf32>
    %cst_57 = arith.constant 0.000000e+00 : f32
    %171 = vector.broadcast %cst_57 : f32 to vector<8x32xf32>
    %c0_58 = arith.constant 0 : index
    %c0_59 = arith.constant 0 : index
    %172 = vector.load %arg10[%c0_58, %c0_59] : memref<64x128xf32, #tpu.memory_space<vmem>>, vector<8x128xf32>
    %cst_60 = arith.constant dense<0.000000e+00> : vector<8x128xf32>
    %173 = tpu.matmul %170, %163, %cst_60 {dimension_numbers = #tpu.dot_dimension_numbers<[1], [0], [0], [1], [0, 0, 1, 1], [], []>} : vector<8x32xf32>, vector<32x128xf32>, vector<8x128xf32> -> vector<8x128xf32>
    %174 = arith.addf %172, %173 : vector<8x128xf32>
    %175 = arith.negf %174 : vector<8x128xf32>
    %176 = math.exp %175 : vector<8x128xf32>
    %cst_61 = arith.constant 1.000000e+00 : f32
    %177 = vector.broadcast %cst_61 : f32 to vector<8x128xf32>
    %178 = arith.addf %177, %176 : vector<8x128xf32>
    %179 = arith.divf %177, %178 : vector<8x128xf32>
    %180 = vector.extract_strided_slice %179 {offsets = [0, 0], sizes = [8, 32], strides = [1, 1]} : vector<8x128xf32> to vector<8x32xf32>
    %181 = vector.extract_strided_slice %179 {offsets = [0, 32], sizes = [8, 32], strides = [1, 1]} : vector<8x128xf32> to vector<8x32xf32>
    %182 = vector.extract_strided_slice %179 {offsets = [0, 96], sizes = [8, 32], strides = [1, 1]} : vector<8x128xf32> to vector<8x32xf32>
    %183 = vector.extract_strided_slice %174 {offsets = [0, 64], sizes = [8, 32], strides = [1, 1]} : vector<8x128xf32> to vector<8x32xf32>
    %184 = math.tanh %183 : vector<8x32xf32>
    %185 = arith.mulf %181, %171 : vector<8x32xf32>
    %186 = arith.mulf %180, %184 : vector<8x32xf32>
    %187 = arith.addf %185, %186 : vector<8x32xf32>
    %188 = math.tanh %187 : vector<8x32xf32>
    %189 = arith.mulf %182, %188 : vector<8x32xf32>
    %c8_62 = arith.constant 8 : index
    %c0_63 = arith.constant 0 : index
    %190 = vector.load %arg10[%c8_62, %c0_63] : memref<64x128xf32, #tpu.memory_space<vmem>>, vector<8x128xf32>
    %cst_64 = arith.constant dense<0.000000e+00> : vector<8x128xf32>
    %191 = tpu.matmul %189, %163, %cst_64 {dimension_numbers = #tpu.dot_dimension_numbers<[1], [0], [0], [1], [0, 0, 1, 1], [], []>} : vector<8x32xf32>, vector<32x128xf32>, vector<8x128xf32> -> vector<8x128xf32>
    %192 = arith.addf %190, %191 : vector<8x128xf32>
    %193 = arith.negf %192 : vector<8x128xf32>
    %194 = math.exp %193 : vector<8x128xf32>
    %cst_65 = arith.constant 1.000000e+00 : f32
    %195 = vector.broadcast %cst_65 : f32 to vector<8x128xf32>
    %196 = arith.addf %195, %194 : vector<8x128xf32>
    %197 = arith.divf %195, %196 : vector<8x128xf32>
    %198 = vector.extract_strided_slice %197 {offsets = [0, 0], sizes = [8, 32], strides = [1, 1]} : vector<8x128xf32> to vector<8x32xf32>
    %199 = vector.extract_strided_slice %197 {offsets = [0, 32], sizes = [8, 32], strides = [1, 1]} : vector<8x128xf32> to vector<8x32xf32>
    %200 = vector.extract_strided_slice %197 {offsets = [0, 96], sizes = [8, 32], strides = [1, 1]} : vector<8x128xf32> to vector<8x32xf32>
    %201 = vector.extract_strided_slice %192 {offsets = [0, 64], sizes = [8, 32], strides = [1, 1]} : vector<8x128xf32> to vector<8x32xf32>
    %202 = math.tanh %201 : vector<8x32xf32>
    %203 = arith.mulf %199, %187 : vector<8x32xf32>
    %204 = arith.mulf %198, %202 : vector<8x32xf32>
    %205 = arith.addf %203, %204 : vector<8x32xf32>
    %206 = math.tanh %205 : vector<8x32xf32>
    %207 = arith.mulf %200, %206 : vector<8x32xf32>
    %c16_66 = arith.constant 16 : index
    %c0_67 = arith.constant 0 : index
    %208 = vector.load %arg10[%c16_66, %c0_67] : memref<64x128xf32, #tpu.memory_space<vmem>>, vector<8x128xf32>
    %cst_68 = arith.constant dense<0.000000e+00> : vector<8x128xf32>
    %209 = tpu.matmul %207, %163, %cst_68 {dimension_numbers = #tpu.dot_dimension_numbers<[1], [0], [0], [1], [0, 0, 1, 1], [], []>} : vector<8x32xf32>, vector<32x128xf32>, vector<8x128xf32> -> vector<8x128xf32>
    %210 = arith.addf %208, %209 : vector<8x128xf32>
    %211 = arith.negf %210 : vector<8x128xf32>
    %212 = math.exp %211 : vector<8x128xf32>
    %cst_69 = arith.constant 1.000000e+00 : f32
    %213 = vector.broadcast %cst_69 : f32 to vector<8x128xf32>
    %214 = arith.addf %213, %212 : vector<8x128xf32>
    %215 = arith.divf %213, %214 : vector<8x128xf32>
    %216 = vector.extract_strided_slice %215 {offsets = [0, 0], sizes = [8, 32], strides = [1, 1]} : vector<8x128xf32> to vector<8x32xf32>
    %217 = vector.extract_strided_slice %215 {offsets = [0, 32], sizes = [8, 32], strides = [1, 1]} : vector<8x128xf32> to vector<8x32xf32>
    %218 = vector.extract_strided_slice %215 {offsets = [0, 96], sizes = [8, 32], strides = [1, 1]} : vector<8x128xf32> to vector<8x32xf32>
    %219 = vector.extract_strided_slice %210 {offsets = [0, 64], sizes = [8, 32], strides = [1, 1]} : vector<8x128xf32> to vector<8x32xf32>
    %220 = math.tanh %219 : vector<8x32xf32>
    %221 = arith.mulf %217, %205 : vector<8x32xf32>
    %222 = arith.mulf %216, %220 : vector<8x32xf32>
    %223 = arith.addf %221, %222 : vector<8x32xf32>
    %224 = math.tanh %223 : vector<8x32xf32>
    %225 = arith.mulf %218, %224 : vector<8x32xf32>
    %c24_70 = arith.constant 24 : index
    %c0_71 = arith.constant 0 : index
    %226 = vector.load %arg10[%c24_70, %c0_71] : memref<64x128xf32, #tpu.memory_space<vmem>>, vector<8x128xf32>
    %cst_72 = arith.constant dense<0.000000e+00> : vector<8x128xf32>
    %227 = tpu.matmul %225, %163, %cst_72 {dimension_numbers = #tpu.dot_dimension_numbers<[1], [0], [0], [1], [0, 0, 1, 1], [], []>} : vector<8x32xf32>, vector<32x128xf32>, vector<8x128xf32> -> vector<8x128xf32>
    %228 = arith.addf %226, %227 : vector<8x128xf32>
    %229 = arith.negf %228 : vector<8x128xf32>
    %230 = math.exp %229 : vector<8x128xf32>
    %cst_73 = arith.constant 1.000000e+00 : f32
    %231 = vector.broadcast %cst_73 : f32 to vector<8x128xf32>
    %232 = arith.addf %231, %230 : vector<8x128xf32>
    %233 = arith.divf %231, %232 : vector<8x128xf32>
    %234 = vector.extract_strided_slice %233 {offsets = [0, 0], sizes = [8, 32], strides = [1, 1]} : vector<8x128xf32> to vector<8x32xf32>
    %235 = vector.extract_strided_slice %233 {offsets = [0, 32], sizes = [8, 32], strides = [1, 1]} : vector<8x128xf32> to vector<8x32xf32>
    %236 = vector.extract_strided_slice %233 {offsets = [0, 96], sizes = [8, 32], strides = [1, 1]} : vector<8x128xf32> to vector<8x32xf32>
    %237 = vector.extract_strided_slice %228 {offsets = [0, 64], sizes = [8, 32], strides = [1, 1]} : vector<8x128xf32> to vector<8x32xf32>
    %238 = math.tanh %237 : vector<8x32xf32>
    %239 = arith.mulf %235, %223 : vector<8x32xf32>
    %240 = arith.mulf %234, %238 : vector<8x32xf32>
    %241 = arith.addf %239, %240 : vector<8x32xf32>
    %242 = math.tanh %241 : vector<8x32xf32>
    %243 = arith.mulf %236, %242 : vector<8x32xf32>
    %c32_74 = arith.constant 32 : index
    %c0_75 = arith.constant 0 : index
    %244 = vector.load %arg10[%c32_74, %c0_75] : memref<64x128xf32, #tpu.memory_space<vmem>>, vector<8x128xf32>
    %cst_76 = arith.constant dense<0.000000e+00> : vector<8x128xf32>
    %245 = tpu.matmul %243, %163, %cst_76 {dimension_numbers = #tpu.dot_dimension_numbers<[1], [0], [0], [1], [0, 0, 1, 1], [], []>} : vector<8x32xf32>, vector<32x128xf32>, vector<8x128xf32> -> vector<8x128xf32>
    %246 = arith.addf %244, %245 : vector<8x128xf32>
    %247 = arith.negf %246 : vector<8x128xf32>
    %248 = math.exp %247 : vector<8x128xf32>
    %cst_77 = arith.constant 1.000000e+00 : f32
    %249 = vector.broadcast %cst_77 : f32 to vector<8x128xf32>
    %250 = arith.addf %249, %248 : vector<8x128xf32>
    %251 = arith.divf %249, %250 : vector<8x128xf32>
    %252 = vector.extract_strided_slice %251 {offsets = [0, 0], sizes = [8, 32], strides = [1, 1]} : vector<8x128xf32> to vector<8x32xf32>
    %253 = vector.extract_strided_slice %251 {offsets = [0, 32], sizes = [8, 32], strides = [1, 1]} : vector<8x128xf32> to vector<8x32xf32>
    %254 = vector.extract_strided_slice %251 {offsets = [0, 96], sizes = [8, 32], strides = [1, 1]} : vector<8x128xf32> to vector<8x32xf32>
    %255 = vector.extract_strided_slice %246 {offsets = [0, 64], sizes = [8, 32], strides = [1, 1]} : vector<8x128xf32> to vector<8x32xf32>
    %256 = math.tanh %255 : vector<8x32xf32>
    %257 = arith.mulf %253, %241 : vector<8x32xf32>
    %258 = arith.mulf %252, %256 : vector<8x32xf32>
    %259 = arith.addf %257, %258 : vector<8x32xf32>
    %260 = math.tanh %259 : vector<8x32xf32>
    %261 = arith.mulf %254, %260 : vector<8x32xf32>
    %c40_78 = arith.constant 40 : index
    %c0_79 = arith.constant 0 : index
    %262 = vector.load %arg10[%c40_78, %c0_79] : memref<64x128xf32, #tpu.memory_space<vmem>>, vector<8x128xf32>
    %cst_80 = arith.constant dense<0.000000e+00> : vector<8x128xf32>
    %263 = tpu.matmul %261, %163, %cst_80 {dimension_numbers = #tpu.dot_dimension_numbers<[1], [0], [0], [1], [0, 0, 1, 1], [], []>} : vector<8x32xf32>, vector<32x128xf32>, vector<8x128xf32> -> vector<8x128xf32>
    %264 = arith.addf %262, %263 : vector<8x128xf32>
    %265 = arith.negf %264 : vector<8x128xf32>
    %266 = math.exp %265 : vector<8x128xf32>
    %cst_81 = arith.constant 1.000000e+00 : f32
    %267 = vector.broadcast %cst_81 : f32 to vector<8x128xf32>
    %268 = arith.addf %267, %266 : vector<8x128xf32>
    %269 = arith.divf %267, %268 : vector<8x128xf32>
    %270 = vector.extract_strided_slice %269 {offsets = [0, 0], sizes = [8, 32], strides = [1, 1]} : vector<8x128xf32> to vector<8x32xf32>
    %271 = vector.extract_strided_slice %269 {offsets = [0, 32], sizes = [8, 32], strides = [1, 1]} : vector<8x128xf32> to vector<8x32xf32>
    %272 = vector.extract_strided_slice %269 {offsets = [0, 96], sizes = [8, 32], strides = [1, 1]} : vector<8x128xf32> to vector<8x32xf32>
    %273 = vector.extract_strided_slice %264 {offsets = [0, 64], sizes = [8, 32], strides = [1, 1]} : vector<8x128xf32> to vector<8x32xf32>
    %274 = math.tanh %273 : vector<8x32xf32>
    %275 = arith.mulf %271, %259 : vector<8x32xf32>
    %276 = arith.mulf %270, %274 : vector<8x32xf32>
    %277 = arith.addf %275, %276 : vector<8x32xf32>
    %278 = math.tanh %277 : vector<8x32xf32>
    %279 = arith.mulf %272, %278 : vector<8x32xf32>
    %c48_82 = arith.constant 48 : index
    %c0_83 = arith.constant 0 : index
    %280 = vector.load %arg10[%c48_82, %c0_83] : memref<64x128xf32, #tpu.memory_space<vmem>>, vector<8x128xf32>
    %cst_84 = arith.constant dense<0.000000e+00> : vector<8x128xf32>
    %281 = tpu.matmul %279, %163, %cst_84 {dimension_numbers = #tpu.dot_dimension_numbers<[1], [0], [0], [1], [0, 0, 1, 1], [], []>} : vector<8x32xf32>, vector<32x128xf32>, vector<8x128xf32> -> vector<8x128xf32>
    %282 = arith.addf %280, %281 : vector<8x128xf32>
    %283 = arith.negf %282 : vector<8x128xf32>
    %284 = math.exp %283 : vector<8x128xf32>
    %cst_85 = arith.constant 1.000000e+00 : f32
    %285 = vector.broadcast %cst_85 : f32 to vector<8x128xf32>
    %286 = arith.addf %285, %284 : vector<8x128xf32>
    %287 = arith.divf %285, %286 : vector<8x128xf32>
    %288 = vector.extract_strided_slice %287 {offsets = [0, 0], sizes = [8, 32], strides = [1, 1]} : vector<8x128xf32> to vector<8x32xf32>
    %289 = vector.extract_strided_slice %287 {offsets = [0, 32], sizes = [8, 32], strides = [1, 1]} : vector<8x128xf32> to vector<8x32xf32>
    %290 = vector.extract_strided_slice %287 {offsets = [0, 96], sizes = [8, 32], strides = [1, 1]} : vector<8x128xf32> to vector<8x32xf32>
    %291 = vector.extract_strided_slice %282 {offsets = [0, 64], sizes = [8, 32], strides = [1, 1]} : vector<8x128xf32> to vector<8x32xf32>
    %292 = math.tanh %291 : vector<8x32xf32>
    %293 = arith.mulf %289, %277 : vector<8x32xf32>
    %294 = arith.mulf %288, %292 : vector<8x32xf32>
    %295 = arith.addf %293, %294 : vector<8x32xf32>
    %296 = math.tanh %295 : vector<8x32xf32>
    %297 = arith.mulf %290, %296 : vector<8x32xf32>
    %c56_86 = arith.constant 56 : index
    %c0_87 = arith.constant 0 : index
    %298 = vector.load %arg10[%c56_86, %c0_87] : memref<64x128xf32, #tpu.memory_space<vmem>>, vector<8x128xf32>
    %cst_88 = arith.constant dense<0.000000e+00> : vector<8x128xf32>
    %299 = tpu.matmul %297, %163, %cst_88 {dimension_numbers = #tpu.dot_dimension_numbers<[1], [0], [0], [1], [0, 0, 1, 1], [], []>} : vector<8x32xf32>, vector<32x128xf32>, vector<8x128xf32> -> vector<8x128xf32>
    %300 = arith.addf %298, %299 : vector<8x128xf32>
    %301 = arith.negf %300 : vector<8x128xf32>
    %302 = math.exp %301 : vector<8x128xf32>
    %cst_89 = arith.constant 1.000000e+00 : f32
    %303 = vector.broadcast %cst_89 : f32 to vector<8x128xf32>
    %304 = arith.addf %303, %302 : vector<8x128xf32>
    %305 = arith.divf %303, %304 : vector<8x128xf32>
    %306 = vector.extract_strided_slice %305 {offsets = [0, 0], sizes = [8, 32], strides = [1, 1]} : vector<8x128xf32> to vector<8x32xf32>
    %307 = vector.extract_strided_slice %305 {offsets = [0, 32], sizes = [8, 32], strides = [1, 1]} : vector<8x128xf32> to vector<8x32xf32>
    %308 = vector.extract_strided_slice %305 {offsets = [0, 96], sizes = [8, 32], strides = [1, 1]} : vector<8x128xf32> to vector<8x32xf32>
    %309 = vector.extract_strided_slice %300 {offsets = [0, 64], sizes = [8, 32], strides = [1, 1]} : vector<8x128xf32> to vector<8x32xf32>
    %310 = math.tanh %309 : vector<8x32xf32>
    %311 = arith.mulf %307, %295 : vector<8x32xf32>
    %312 = arith.mulf %306, %310 : vector<8x32xf32>
    %313 = arith.addf %311, %312 : vector<8x32xf32>
    %314 = math.tanh %313 : vector<8x32xf32>
    %315 = arith.mulf %308, %314 : vector<8x32xf32>
    %c0_90 = arith.constant 0 : index
    %c0_91 = arith.constant 0 : index
    %316 = vector.load %arg7[%c0_90, %c0_91] : memref<1x32xf32, #tpu.memory_space<vmem>>, vector<1x32xf32>
    %317 = vector.broadcast %316 : vector<1x32xf32> to vector<8x32xf32>
    %318 = arith.mulf %315, %317 : vector<8x32xf32>
    %cst_92 = arith.constant dense<0.000000e+00> : vector<8xf32>
    %319 = vector.multi_reduction <add>, %318, %cst_92 [1] : vector<8x32xf32> to vector<8xf32>
    %320 = vector.shape_cast %319 : vector<8xf32> to vector<8x1xf32>
    %c0_93 = arith.constant 0 : index
    %c0_94 = arith.constant 0 : index
    %321 = vector.load %arg8[%c0_93, %c0_94] : memref<1x1xf32, #tpu.memory_space<vmem>>, vector<1x1xf32>
    %322 = vector.broadcast %321 : vector<1x1xf32> to vector<8x1xf32>
    %323 = arith.addf %320, %322 : vector<8x1xf32>
    %c0_95 = arith.constant 0 : index
    %c0_96 = arith.constant 0 : index
    %324 = vector.load %arg9[%c0_95, %c0_96] : memref<8x1xf32, #tpu.memory_space<vmem>>, vector<8x1xf32>
    tpu.vector_store %arg9[%c0_95, %c0_96], %323 {strides = array<i32>} : memref<8x1xf32, #tpu.memory_space<vmem>>, vector<8x1xf32>,
    return
  }
}

</mosaic_0001>

<llo_original>
// kernel: lstm_pv_forward.1
$region0: #{lstm_pv_forward.1}
  #allocation0 [shape = 'u32[]', space=smem, size = 0x4, offset = 0x4, fixed_abs, tag = 'smem constant byte address 0x4 - core index']
  #allocation1 [shape = 'u32[144,128]{1,0:T(1,128)}', space=vmem, size = 0x12000, scoped, tag = 'internal scratch']
  #allocation2 [shape = 'f32[64,128]{1,0:T(8,128)}', space=vmem, size = 0x8000, scoped, tag = 'scratch operand']
  #allocation3 [shape = 'f32[64,32]{1,0:T(8,128)}', space=vmem, size = 0x8000, scoped, tag = 'scratch operand']
  #allocation4 [shape = 'f32[1,1]{1,0:T(1,128)S(1)}', space=vmem, size = 0x200, scoped, tag = 'scoped memory for lstm_pv_forward.1']
  %s0 = inlined_call_operand.hbm [shape: f32[64,16], index: 0, kind: input, shape index: {}]
  %s1 = inlined_call_operand.hbm [shape: f32[16,128], index: 1, kind: input, shape index: {}]
  %s2 = inlined_call_operand.hbm [shape: f32[32,128], index: 2, kind: input, shape index: {}]
  %s3 = inlined_call_operand.vmem [shape: f32[1,128], index: 3, kind: input, shape index: {}]
  %s4 = inlined_call_operand.hbm [shape: f32[32,128], index: 4, kind: input, shape index: {}]
  %s5 = inlined_call_operand.hbm [shape: f32[32,128], index: 5, kind: input, shape index: {}]
  %s6 = inlined_call_operand.vmem [shape: f32[1,128], index: 6, kind: input, shape index: {}]
  %s7 = inlined_call_operand.vmem [shape: f32[1,32], index: 7, kind: input, shape index: {}]
  %s8 = inlined_call_operand.<no memory space> [shape: f32[1,1], index: 8, kind: input, shape index: {}]
  %s9 = inlined_call_operand.vmem [shape: f32[8,1], index: 9, kind: output, shape index: {}]
  %s10 = sld [smem:[#allocation0]]
  $region66: #{lstm_pv_forward.1} parent=0
    _
  %s12 = ssub.s32 1, %s10
  %s13 = scalar_select 0, %s12, %s10
  %v14 = vstv %s8
  %15 = vst [vmem:[#allocation4] sm:$0x1] %v14
  $region1: #{lstm_pv_forward.1} parent=0
    #allocation5 [shape = 'u8[32768]{0}', space=vmem, size = 0x8000, scoped, tag = 'input window, operand 0, single buffered']
    #allocation6 [shape = 's32[1]{0}', space=sflag, size = 0x4, scoped, tag = 'scoped memory for lstm_pv_forward.1']
    #allocation7 [shape = 'u8[8192]{0}', space=vmem, size = 0x2000, scoped, tag = 'input window, operand 1, single buffered']
    #allocation8 [shape = 's32[1]{0}', space=sflag, size = 0x4, scoped, tag = 'scoped memory for lstm_pv_forward.1']
    #allocation9 [shape = 'u8[16384]{0}', space=vmem, size = 0x4000, scoped, tag = 'input window, operand 2, single buffered']
    #allocation10 [shape = 'u8[16384]{0}', space=vmem, size = 0x4000, scoped, tag = 'input window, operand 4, single buffered']
    #allocation11 [shape = 's32[1]{0}', space=sflag, size = 0x4, scoped, tag = 'scoped memory for lstm_pv_forward.1']
    #allocation12 [shape = 'u8[16384]{0}', space=vmem, size = 0x4000, scoped, tag = 'input window, operand 5, single buffered']
    %16 = vsyncpa [#allocation6], 0
    %17 = vsyncpa [#allocation8], 0
    %18 = vsyncpa [#allocation11], 0
    // Predicated region
    $region2: #{lstm_pv_forward.1} parent=1 // pred_check
      _
    $region3: #{lstm_pv_forward.1} parent=1 // pred_check_branch
      %20 = sbr.rel (0) target = $region5
    $region4: #{lstm_pv_forward.1} parent=1 // pred_region
      %s22 = ssub.s32 1024, 1024
      %23 = vsyncadd [#allocation6], %s22
      %s24 = sshll.u32 [#allocation5], 4
      %s25 = int_to_ptr.vmem [resolvable:$true] %s24
      %30 = dma.hbm_to_vmem [thread:$0]  %s0, 1024, %s25, [#allocation6], 128, 128, 8
    $region5: #{lstm_pv_forward.1} parent=1 // pred_fallthru
      _
    // Predicated region
    $region6: #{lstm_pv_forward.1} parent=1 // pred_check
      _
    $region7: #{lstm_pv_forward.1} parent=1 // pred_check_branch
      %32 = sbr.rel (0) target = $region9
    $region8: #{lstm_pv_forward.1} parent=1 // pred_region
      %s34 = ssub.s32 256, 256
      %35 = vsyncadd [#allocation8], %s34
      %s36 = sshll.u32 [#allocation7], 4
      %s37 = int_to_ptr.vmem [resolvable:$true] %s36
      %42 = dma.hbm_to_vmem [thread:$0]  %s1, 256, %s37, [#allocation8], 128, 128, 8
    $region9: #{lstm_pv_forward.1} parent=1 // pred_fallthru
      _
    // Predicated region
    $region10: #{lstm_pv_forward.1} parent=1 // pred_check
      _
    $region11: #{lstm_pv_forward.1} parent=1 // pred_check_branch
      %44 = sbr.rel (0) target = $region13
    $region12: #{lstm_pv_forward.1} parent=1 // pred_region
      %s46 = ssub.s32 512, 512
      %47 = vsyncadd [#allocation8], %s46
      %s48 = sshll.u32 [#allocation9], 4
      %s49 = int_to_ptr.vmem [resolvable:$true] %s48
      %54 = dma.hbm_to_vmem [thread:$0]  %s2, 512, %s49, [#allocation8], 128, 128, 8
    $region13: #{lstm_pv_forward.1} parent=1 // pred_fallthru
      _
    // Predicated region
    $region14: #{lstm_pv_forward.1} parent=1 // pred_check
      _
    $region15: #{lstm_pv_forward.1} parent=1 // pred_check_branch
      %56 = sbr.rel (0) target = $region17
    $region16: #{lstm_pv_forward.1} parent=1 // pred_region
      _
    $region17: #{lstm_pv_forward.1} parent=1 // pred_fallthru
      _
    // Predicated region
    $region18: #{lstm_pv_forward.1} parent=1 // pred_check
      _
    $region19: #{lstm_pv_forward.1} parent=1 // pred_check_branch
      %58 = sbr.rel (0) target = $region21
    $region20: #{lstm_pv_forward.1} parent=1 // pred_region
      %s60 = ssub.s32 512, 512
      %61 = vsyncadd [#allocation11], %s60
      %s62 = sshll.u32 [#allocation10], 4
      %s63 = int_to_ptr.vmem [resolvable:$true] %s62
      %68 = dma.hbm_to_vmem [thread:$0]  %s4, 512, %s63, [#allocation11], 128, 128, 8
    $region21: #{lstm_pv_forward.1} parent=1 // pred_fallthru
      _
    // Predicated region
    $region22: #{lstm_pv_forward.1} parent=1 // pred_check
      _
    $region23: #{lstm_pv_forward.1} parent=1 // pred_check_branch
      %70 = sbr.rel (0) target = $region25
    $region24: #{lstm_pv_forward.1} parent=1 // pred_region
      %s72 = ssub.s32 512, 512
      %73 = vsyncadd [#allocation11], %s72
      %s74 = sshll.u32 [#allocation12], 4
      %s75 = int_to_ptr.vmem [resolvable:$true] %s74
      %80 = dma.hbm_to_vmem [thread:$0]  %s5, 512, %s75, [#allocation11], 128, 128, 8
    $region25: #{lstm_pv_forward.1} parent=1 // pred_fallthru
      _
    // Predicated region
    $region26: #{lstm_pv_forward.1} parent=1 // pred_check
      _
    $region27: #{lstm_pv_forward.1} parent=1 // pred_check_branch
      %82 = sbr.rel (0) target = $region29
    $region28: #{lstm_pv_forward.1} parent=1 // pred_region
      _
    $region29: #{lstm_pv_forward.1} parent=1 // pred_fallthru
      _
    // Predicated region
    $region30: #{lstm_pv_forward.1} parent=1 // pred_check
      _
    $region31: #{lstm_pv_forward.1} parent=1 // pred_check_branch
      %84 = sbr.rel (0) target = $region33
    $region32: #{lstm_pv_forward.1} parent=1 // pred_region
      _
    $region33: #{lstm_pv_forward.1} parent=1 // pred_fallthru
      _
    // Predicated region
    $region34: #{lstm_pv_forward.1} parent=1 // pred_check
      _
    $region35: #{lstm_pv_forward.1} parent=1 // pred_check_branch
      %86 = sbr.rel (0) target = $region37
    $region36: #{lstm_pv_forward.1} parent=1 // pred_region
      _
    $region37: #{lstm_pv_forward.1} parent=1 // pred_fallthru
      _
    // Predicated region
    $region38: #{lstm_pv_forward.1} parent=1 // pred_check
      _
    $region39: #{lstm_pv_forward.1} parent=1 // pred_check_branch
      %88 = sbr.rel (0) target = $region41
    $region40: #{lstm_pv_forward.1} parent=1 // pred_region
      %89 = dma.done [#allocation6], 1024
    $region41: #{lstm_pv_forward.1} parent=1 // pred_fallthru
      _
    // Predicated region
    $region42: #{lstm_pv_forward.1} parent=1 // pred_check
      _
    $region43: #{lstm_pv_forward.1} parent=1 // pred_check_branch
      %91 = sbr.rel (0) target = $region45
    $region44: #{lstm_pv_forward.1} parent=1 // pred_region
      %92 = dma.done [#allocation8], 256
    $region45: #{lstm_pv_forward.1} parent=1 // pred_fallthru
      _
    // Predicated region
    $region46: #{lstm_pv_forward.1} parent=1 // pred_check
      _
    $region47: #{lstm_pv_forward.1} parent=1 // pred_check_branch
      %94 = sbr.rel (0) target = $region49
    $region48: #{lstm_pv_forward.1} parent=1 // pred_region
      %95 = dma.done [#allocation8], 512
    $region49: #{lstm_pv_forward.1} parent=1 // pred_fallthru
      _
    // Predicated region
    $region50: #{lstm_pv_forward.1} parent=1 // pred_check
      _
    $region51: #{lstm_pv_forward.1} parent=1 // pred_check_branch
      %97 = sbr.rel (0) target = $region53
    $region52: #{lstm_pv_forward.1} parent=1 // pred_region
      %98 = dma.done [#allocation11], 512
    $region53: #{lstm_pv_forward.1} parent=1 // pred_fallthru
      _
    // Predicated region
    $region54: #{lstm_pv_forward.1} parent=1 // pred_check
      _
    $region55: #{lstm_pv_forward.1} parent=1 // pred_check_branch
      %100 = sbr.rel (0) target = $region57
    $region56: #{lstm_pv_forward.1} parent=1 // pred_region
      %101 = dma.done [#allocation11], 512
    $region57: #{lstm_pv_forward.1} parent=1 // pred_fallthru
      _
    %v102 = vld [vmem:[#allocation7] sm:$0xff]
    %v103 = vld [vmem:[#allocation7 + $0x8] sm:$0xff]
    %v104 = vld [vmem:[#allocation9] sm:$0xff]
    %v105 = vld [vmem:[#allocation9 + $0x8] sm:$0xff]
    %v106 = vld [vmem:[#allocation9 + $0x10] sm:$0xff]
    %v107 = vld [vmem:[#allocation9 + $0x18] sm:$0xff]
    %v108 = vld [vmem:[%s3] sm:$0x1]
    %v109 = vld [vmem:[#allocation5] sm:$0xff]
    %v110 = vld [vmem:[#allocation5 + $0x8] sm:$0xff]
    %v111 = vld [vmem:[#allocation5 + $0x10] sm:$0xff]
    %v112 = vld [vmem:[#allocation5 + $0x18] sm:$0xff]
    %v113 = vld [vmem:[#allocation5 + $0x20] sm:$0xff]
    %v114 = vld [vmem:[#allocation5 + $0x28] sm:$0xff]
    %v115 = vld [vmem:[#allocation5 + $0x30] sm:$0xff]
    %v116 = vld [vmem:[#allocation5 + $0x38] sm:$0xff]
    %v118 = vlaneseq
    %v119 = vshrl.u32 %v118, 7
    %v120 = vsub.s32 0, %v119
    %v121 = vrot.slane %v108, %v120
    %vm123 = vcmask 130048
    %v125 = vsel %vm123, %v109, 0
    %v128 = vsel %vm123, %v110, 0
    %v131 = vsel %vm123, %v111, 0
    %v134 = vsel %vm123, %v112, 0
    %v137 = vsel %vm123, %v113, 0
    %v140 = vsel %vm123, %v114, 0
    %v143 = vsel %vm123, %v115, 0
    %v146 = vsel %vm123, %v116, 0
    %148 = vmatprep.subr.mxu0 0.0
    %149 = vmatpush1.msra.mxu0 0.0
    %150 = vmatprep.subr.mxu0 0.0
    %151 = vmatpush1.msra.mxu0 0.0
    %152 = vmatprep.subr.mxu0 0.0
    %153 = vmatpush1.msra.mxu0 0.0
    %154 = vmatprep.subr.mxu0 0.0
    %155 = vmatpush1.msra.mxu0 0.0
    %156 = vmatprep.subr.mxu0 0.0
    %157 = vmatpush1.msra.mxu0 0.0
    %158 = vmatprep.subr.mxu0 0.0
    %159 = vmatpush1.msra.mxu0 0.0
    %160 = vmatprep.subr.mxu0 0.0
    %161 = vmatpush1.msra.mxu0 0.0
    %162 = vmatprep.subr.mxu0 0.0
    %163 = vmatpush1.msra.mxu0 0.0
    %164 = vmatprep.subr.mxu0 0.0
    %165 = vmatpush1.msra.mxu0 0.0
    %166 = vmatprep.subr.mxu0 0.0
    %167 = vmatpush1.msra.mxu0 0.0
    %168 = vmatprep.subr.mxu0 0.0
    %169 = vmatpush1.msra.mxu0 0.0
    %170 = vmatprep.subr.mxu0 0.0
    %171 = vmatpush1.msra.mxu0 0.0
    %172 = vmatprep.subr.mxu0 0.0
    %173 = vmatpush1.msra.mxu0 0.0
    %174 = vmatprep.subr.mxu0 0.0
    %175 = vmatpush1.msra.mxu0 0.0
    %176 = vmatprep.subr.mxu0 0.0
    %177 = vmatpush1.msra.mxu0 %v103
    %178 = vmatprep.subr.mxu0 0.0
    %179 = vmatpush1.msra.mxu0 %v102
    %180 = vmatprep.subr.mxu0 0.0
    %181 = vmatpush2.msra.mxu0 0.0
    %182 = vmatprep.subr.mxu0 0.0
    %183 = vmatpush2.msra.mxu0 0.0
    %184 = vmatprep.subr.mxu0 0.0
    %185 = vmatpush2.msra.mxu0 0.0
    %186 = vmatprep.subr.mxu0 0.0
    %187 = vmatpush2.msra.mxu0 0.0
    %188 = vmatprep.subr.mxu0 0.0
    %189 = vmatpush2.msra.mxu0 0.0
    %190 = vmatprep.subr.mxu0 0.0
    %191 = vmatpush2.msra.mxu0 0.0
    %192 = vmatprep.subr.mxu0 0.0
    %193 = vmatpush2.msra.mxu0 0.0
    %194 = vmatprep.subr.mxu0 0.0
    %195 = vmatpush2.msra.mxu0 0.0
    %196 = vmatprep.subr.mxu0 0.0
    %197 = vmatpush2.msra.mxu0 0.0
    %198 = vmatprep.subr.mxu0 0.0
    %199 = vmatpush2.msra.mxu0 0.0
    %200 = vmatprep.subr.mxu0 0.0
    %201 = vmatpush2.msra.mxu0 0.0
    %202 = vmatprep.subr.mxu0 0.0
    %203 = vmatpush2.msra.mxu0 0.0
    %204 = vmatprep.subr.mxu0 0.0
    %205 = vmatpush2.msra.mxu0 0.0
    %206 = vmatprep.subr.mxu0 0.0
    %207 = vmatpush2.msra.mxu0 0.0
    %208 = vmatprep.subr.mxu0 0.0
    %209 = vmatpush2.msra.mxu0 0.0
    %210 = vmatprep.subr.mxu0 0.0
    %211 = vmatpush2.msra.mxu0 0.0
    %212 = vmatprep.mubr.f32.mxu0 0.0
    %213 = vmatmul.mubr.f32.gmra.mxu0 %v125
    %v214 = vpop.f32.mrf.mxu0
    %v215 = vadd.f32 %v121, %v214
    %v216 = vpop.f32.mrf.mxu0
    %217 = vmatprep.mubr.f32.mxu0 0.0
    %218 = vmatmul.mubr.f32.gmra.mxu0 %v128
    %v219 = vpop.f32.mrf.mxu0
    %v220 = vadd.f32 %v121, %v219
    %v221 = vpop.f32.mrf.mxu0
    %222 = vmatprep.mubr.f32.mxu0 0.0
    %223 = vmatmul.mubr.f32.gmra.mxu0 %v131
    %v224 = vpop.f32.mrf.mxu0
    %v225 = vadd.f32 %v121, %v224
    %v226 = vpop.f32.mrf.mxu0
    %227 = vmatprep.mubr.f32.mxu0 0.0
    %228 = vmatmul.mubr.f32.gmra.mxu0 %v134
    %v229 = vpop.f32.mrf.mxu0
    %v230 = vadd.f32 %v121, %v229
    %v231 = vpop.f32.mrf.mxu0
    %232 = vmatprep.mubr.f32.mxu0 0.0
    %233 = vmatmul.mubr.f32.gmra.mxu0 %v137
    %v234 = vpop.f32.mrf.mxu0
    %v235 = vadd.f32 %v121, %v234
    %v236 = vpop.f32.mrf.mxu0
    %237 = vmatprep.mubr.f32.mxu0 0.0
    %238 = vmatmul.mubr.f32.gmra.mxu0 %v140
    %v239 = vpop.f32.mrf.mxu0
    %v240 = vadd.f32 %v121, %v239
    %v241 = vpop.f32.mrf.mxu0
    %242 = vmatprep.mubr.f32.mxu0 0.0
    %243 = vmatmul.mubr.f32.gmra.mxu0 %v143
    %v244 = vpop.f32.mrf.mxu0
    %v245 = vadd.f32 %v121, %v244
    %v246 = vpop.f32.mrf.mxu0
    %247 = vmatprep.mubr.f32.mxu0 0.0
    %248 = vmatmul.mubr.f32.gmra.mxu0 %v146
    %v249 = vpop.f32.mrf.mxu0
    %v250 = vadd.f32 %v121, %v249
    %v251 = vpop.f32.mrf.mxu0
    %252 = vdwg.mxu0
    %253 = vst [vmem:[#allocation2] sm:$0xff] %v215
    %254 = vst [vmem:[#allocation2 + $0x8] sm:$0xff] %v220
    %255 = vst [vmem:[#allocation2 + $0x10] sm:$0xff] %v225
    %256 = vst [vmem:[#allocation2 + $0x18] sm:$0xff] %v230
    %257 = vst [vmem:[#allocation2 + $0x20] sm:$0xff] %v235
    %258 = vst [vmem:[#allocation2 + $0x28] sm:$0xff] %v240
    %259 = vst [vmem:[#allocation2 + $0x30] sm:$0xff] %v245
    %260 = vst [vmem:[#allocation2 + $0x38] sm:$0xff] %v250
    %v261 = vld [vmem:[#allocation2] ss:$8 sm:$0xf]
    %v262 = vld [vmem:[#allocation2] ss:$8 sm:$0xf0]
    %v263 = vor.u32 %v261, %v262
    %vm264 = vcmask 261120
    %v266 = vsel %vm264, 0.0, 0
    %268 = vmatprep.subr.mxu0 0.0
    %269 = vmatpush1.msra.mxu0 0.0
    %270 = vmatprep.subr.mxu0 0.0
    %271 = vmatpush1.msra.mxu0 0.0
    %272 = vmatprep.subr.mxu0 0.0
    %273 = vmatpush1.msra.mxu0 0.0
    %274 = vmatprep.subr.mxu0 0.0
    %275 = vmatpush1.msra.mxu0 0.0
    %276 = vmatprep.subr.mxu0 0.0
    %277 = vmatpush1.msra.mxu0 0.0
    %278 = vmatprep.subr.mxu0 0.0
    %279 = vmatpush1.msra.mxu0 0.0
    %280 = vmatprep.subr.mxu0 0.0
    %281 = vmatpush1.msra.mxu0 0.0
    %282 = vmatprep.subr.mxu0 0.0
    %283 = vmatpush1.msra.mxu0 0.0
    %284 = vmatprep.subr.mxu0 0.0
    %285 = vmatpush1.msra.mxu0 0.0
    %286 = vmatprep.subr.mxu0 0.0
    %287 = vmatpush1.msra.mxu0 0.0
    %288 = vmatprep.subr.mxu0 0.0
    %289 = vmatpush1.msra.mxu0 0.0
    %290 = vmatprep.subr.mxu0 0.0
    %291 = vmatpush1.msra.mxu0 0.0
    %292 = vmatprep.subr.mxu0 0.0
    %293 = vmatpush1.msra.mxu0 %v107
    %294 = vmatprep.subr.mxu0 0.0
    %295 = vmatpush1.msra.mxu0 %v106
    %296 = vmatprep.subr.mxu0 0.0
    %297 = vmatpush1.msra.mxu0 %v105
    %298 = vmatprep.subr.mxu0 0.0
    %299 = vmatpush1.msra.mxu0 %v104
    %300 = vmatprep.subr.mxu0 0.0
    %301 = vmatpush2.msra.mxu0 0.0
    %302 = vmatprep.subr.mxu0 0.0
    %303 = vmatpush2.msra.mxu0 0.0
    %304 = vmatprep.subr.mxu0 0.0
    %305 = vmatpush2.msra.mxu0 0.0
    %306 = vmatprep.subr.mxu0 0.0
    %307 = vmatpush2.msra.mxu0 0.0
    %308 = vmatprep.subr.mxu0 0.0
    %309 = vmatpush2.msra.mxu0 0.0
    %310 = vmatprep.subr.mxu0 0.0
    %311 = vmatpush2.msra.mxu0 0.0
    %312 = vmatprep.subr.mxu0 0.0
    %313 = vmatpush2.msra.mxu0 0.0
    %314 = vmatprep.subr.mxu0 0.0
    %315 = vmatpush2.msra.mxu0 0.0
    %316 = vmatprep.subr.mxu0 0.0
    %317 = vmatpush2.msra.mxu0 0.0
    %318 = vmatprep.subr.mxu0 0.0
    %319 = vmatpush2.msra.mxu0 0.0
    %320 = vmatprep.subr.mxu0 0.0
    %321 = vmatpush2.msra.mxu0 0.0
    %322 = vmatprep.subr.mxu0 0.0
    %323 = vmatpush2.msra.mxu0 0.0
    %324 = vmatprep.subr.mxu0 0.0
    %325 = vmatpush2.msra.mxu0 0.0
    %326 = vmatprep.subr.mxu0 0.0
    %327 = vmatpush2.msra.mxu0 0.0
    %328 = vmatprep.subr.mxu0 0.0
    %329 = vmatpush2.msra.mxu0 0.0
    %330 = vmatprep.subr.mxu0 0.0
    %331 = vmatpush2.msra.mxu0 0.0
    %332 = vmatprep.mubr.f32.mxu0 0.0
    %333 = vmatmul.mubr.f32.gmra.mxu0 %v266
    %v334 = vpop.f32.mrf.mxu0
    %v335 = vadd.f32 0.0, %v334
    %v336 = vpop.f32.mrf.mxu0
    %337 = vdwg.mxu0
    %v338 = vadd.f32 %v263, %v335
    %v339 = vxor.u32 %v338, 2147483648
    %v340 = vmul.f32 %v339, 1.442695
    %v341 = vpow.pop %v340
    %v342 = vadd.f32 %v341, 1.0
    %v343 = vrcp.pop %v342
    %v344 = vmul.f32 1.0, %v343
    %v345 = vtanh.pop %v338
    %v346 = vmul.f32 %v344, 0.0
    %348 = vrot.lane.b32.xlu0 %v345, 64
    %v349 = vpop.permute.xlu0 %348
    %v351 = vmul.f32 %v344, %v349
    %353 = vrot.lane.b32.xlu0 %v351, 32
    %v354 = vpop.permute.xlu0 %353
    %v356 = vadd.f32 %v346, %v354
    %v357 = vtanh.pop %v356
    %359 = vrot.lane.b32.xlu0 %v357, 64
    %v360 = vpop.permute.xlu0 %359
    %v362 = vmul.f32 %v344, %v360
    %364 = vrot.lane.b32.xlu0 %v362, 32
    %v365 = vpop.permute.xlu0 %364
    %367 = vst.msk [vmem:[#allocation3] sm:$0xff] %vm264, %v365
    %s368 = scalar_lea.vmem [#allocation2], 1
    %v369 = vld [vmem:[%s368] ss:$8 sm:$0xf]
    %v370 = vld [vmem:[%s368] ss:$8 sm:$0xf0]
    %v371 = vor.u32 %v369, %v370
    %v372 = vsel %vm264, %v365, 0
    %374 = vmatprep.subr.mxu0 0.0
    %375 = vmatpush1.msra.mxu0 0.0
    %376 = vmatprep.subr.mxu0 0.0
    %377 = vmatpush1.msra.mxu0 0.0
    %378 = vmatprep.subr.mxu0 0.0
    %379 = vmatpush1.msra.mxu0 0.0
    %380 = vmatprep.subr.mxu0 0.0
    %381 = vmatpush1.msra.mxu0 0.0
    %382 = vmatprep.subr.mxu0 0.0
    %383 = vmatpush1.msra.mxu0 0.0
    %384 = vmatprep.subr.mxu0 0.0
    %385 = vmatpush1.msra.mxu0 0.0
    %386 = vmatprep.subr.mxu0 0.0
    %387 = vmatpush1.msra.mxu0 0.0
    %388 = vmatprep.subr.mxu0 0.0
    %389 = vmatpush1.msra.mxu0 0.0
    %390 = vmatprep.subr.mxu0 0.0
    %391 = vmatpush1.msra.mxu0 0.0
    %392 = vmatprep.subr.mxu0 0.0
    %393 = vmatpush1.msra.mxu0 0.0
    %394 = vmatprep.subr.mxu0 0.0
    %395 = vmatpush1.msra.mxu0 0.0
    %396 = vmatprep.subr.mxu0 0.0
    %397 = vmatpush1.msra.mxu0 0.0
    %398 = vmatprep.subr.mxu0 0.0
    %399 = vmatpush1.msra.mxu0 %v107
    %400 = vmatprep.subr.mxu0 0.0
    %401 = vmatpush1.msra.mxu0 %v106
    %402 = vmatprep.subr.mxu0 0.0
    %403 = vmatpush1.msra.mxu0 %v105
    %404 = vmatprep.subr.mxu0 0.0
    %405 = vmatpush1.msra.mxu0 %v104
    %406 = vmatprep.subr.mxu0 0.0
    %407 = vmatpush2.msra.mxu0 0.0
    %408 = vmatprep.subr.mxu0 0.0
    %409 = vmatpush2.msra.mxu0 0.0
    %410 = vmatprep.subr.mxu0 0.0
    %411 = vmatpush2.msra.mxu0 0.0
    %412 = vmatprep.subr.mxu0 0.0
    %413 = vmatpush2.msra.mxu0 0.0
    %414 = vmatprep.subr.mxu0 0.0
    %415 = vmatpush2.msra.mxu0 0.0
    %416 = vmatprep.subr.mxu0 0.0
    %417 = vmatpush2.msra.mxu0 0.0
    %418 = vmatprep.subr.mxu0 0.0
    %419 = vmatpush2.msra.mxu0 0.0
    %420 = vmatprep.subr.mxu0 0.0
    %421 = vmatpush2.msra.mxu0 0.0
    %422 = vmatprep.subr.mxu0 0.0
    %423 = vmatpush2.msra.mxu0 0.0
    %424 = vmatprep.subr.mxu0 0.0
    %425 = vmatpush2.msra.mxu0 0.0
    %426 = vmatprep.subr.mxu0 0.0
    %427 = vmatpush2.msra.mxu0 0.0
    %428 = vmatprep.subr.mxu0 0.0
    %429 = vmatpush2.msra.mxu0 0.0
    %430 = vmatprep.subr.mxu0 0.0
    %431 = vmatpush2.msra.mxu0 0.0
    %432 = vmatprep.subr.mxu0 0.0
    %433 = vmatpush2.msra.mxu0 0.0
    %434 = vmatprep.subr.mxu0 0.0
    %435 = vmatpush2.msra.mxu0 0.0
    %436 = vmatprep.subr.mxu0 0.0
    %437 = vmatpush2.msra.mxu0 0.0
    %438 = vmatprep.mubr.f32.mxu0 0.0
    %439 = vmatmul.mubr.f32.gmra.mxu0 %v372
    %v440 = vpop.f32.mrf.mxu0
    %v441 = vadd.f32 0.0, %v440
    %v442 = vpop.f32.mrf.mxu0
    %443 = vdwg.mxu0
    %v444 = vadd.f32 %v371, %v441
    %v445 = vxor.u32 %v444, 2147483648
    %v446 = vmul.f32 %v445, 1.442695
    %v447 = vpow.pop %v446
    %v448 = vadd.f32 %v447, 1.0
    %v449 = vrcp.pop %v448
    %v450 = vmul.f32 1.0, %v449
    %v451 = vtanh.pop %v444
    %v452 = vmul.f32 %v450, %v356
    %454 = vrot.lane.b32.xlu0 %v451, 64
    %v455 = vpop.permute.xlu0 %454
    %v457 = vmul.f32 %v450, %v455
    %459 = vrot.lane.b32.xlu0 %v457, 32
    %v460 = vpop.permute.xlu0 %459
    %v462 = vadd.f32 %v452, %v460
    %v463 = vtanh.pop %v462
    %465 = vrot.lane.b32.xlu0 %v463, 64
    %v466 = vpop.permute.xlu0 %465
    %v468 = vmul.f32 %v450, %v466
    %470 = vrot.lane.b32.xlu0 %v468, 32
    %v471 = vpop.permute.xlu0 %470
    %473 = vst.msk [vmem:[#allocation3 + $0x8] sm:$0xff] %vm264, %v471
    %s474 = scalar_lea.vmem [#allocation2], 2
    %v475 = vld [vmem:[%s474] ss:$8 sm:$0xf]
    %v476 = vld [vmem:[%s474] ss:$8 sm:$0xf0]
    %v477 = vor.u32 %v475, %v476
    %v478 = vsel %vm264, %v471, 0
    %480 = vmatprep.subr.mxu0 0.0
    %481 = vmatpush1.msra.mxu0 0.0
    %482 = vmatprep.subr.mxu0 0.0
    %483 = vmatpush1.msra.mxu0 0.0
    %484 = vmatprep.subr.mxu0 0.0
    %485 = vmatpush1.msra.mxu0 0.0
    %486 = vmatprep.subr.mxu0 0.0
    %487 = vmatpush1.msra.mxu0 0.0
    %488 = vmatprep.subr.mxu0 0.0
    %489 = vmatpush1.msra.mxu0 0.0
    %490 = vmatprep.subr.mxu0 0.0
    %491 = vmatpush1.msra.mxu0 0.0
    %492 = vmatprep.subr.mxu0 0.0
    %493 = vmatpush1.msra.mxu0 0.0
    %494 = vmatprep.subr.mxu0 0.0
    %495 = vmatpush1.msra.mxu0 0.0
    %496 = vmatprep.subr.mxu0 0.0
    %497 = vmatpush1.msra.mxu0 0.0
    %498 = vmatprep.subr.mxu0 0.0
    %499 = vmatpush1.msra.mxu0 0.0
    %500 = vmatprep.subr.mxu0 0.0
    %501 = vmatpush1.msra.mxu0 0.0
    %502 = vmatprep.subr.mxu0 0.0
    %503 = vmatpush1.msra.mxu0 0.0
    %504 = vmatprep.subr.mxu0 0.0
    %505 = vmatpush1.msra.mxu0 %v107
    %506 = vmatprep.subr.mxu0 0.0
    %507 = vmatpush1.msra.mxu0 %v106
    %508 = vmatprep.subr.mxu0 0.0
    %509 = vmatpush1.msra.mxu0 %v105
    %510 = vmatprep.subr.mxu0 0.0
    %511 = vmatpush1.msra.mxu0 %v104
    %512 = vmatprep.subr.mxu0 0.0
    %513 = vmatpush2.msra.mxu0 0.0
    %514 = vmatprep.subr.mxu0 0.0
    %515 = vmatpush2.msra.mxu0 0.0
    %516 = vmatprep.subr.mxu0 0.0
    %517 = vmatpush2.msra.mxu0 0.0
    %518 = vmatprep.subr.mxu0 0.0
    %519 = vmatpush2.msra.mxu0 0.0
    %520 = vmatprep.subr.mxu0 0.0
    %521 = vmatpush2.msra.mxu0 0.0
    %522 = vmatprep.subr.mxu0 0.0
    %523 = vmatpush2.msra.mxu0 0.0
    %524 = vmatprep.subr.mxu0 0.0
    %525 = vmatpush2.msra.mxu0 0.0
    %526 = vmatprep.subr.mxu0 0.0
    %527 = vmatpush2.msra.mxu0 0.0
    %528 = vmatprep.subr.mxu0 0.0
    %529 = vmatpush2.msra.mxu0 0.0
    %530 = vmatprep.subr.mxu0 0.0
    %531 = vmatpush2.msra.mxu0 0.0
    %532 = vmatprep.subr.mxu0 0.0
    %533 = vmatpush2.msra.mxu0 0.0
    %534 = vmatprep.subr.mxu0 0.0
    %535 = vmatpush2.msra.mxu0 0.0
    %536 = vmatprep.subr.mxu0 0.0
    %537 = vmatpush2.msra.mxu0 0.0
    %538 = vmatprep.subr.mxu0 0.0
    %539 = vmatpush2.msra.mxu0 0.0
    %540 = vmatprep.subr.mxu0 0.0
    %541 = vmatpush2.msra.mxu0 0.0
    %542 = vmatprep.subr.mxu0 0.0
    %543 = vmatpush2.msra.mxu0 0.0
    %544 = vmatprep.mubr.f32.mxu0 0.0
    %545 = vmatmul.mubr.f32.gmra.mxu0 %v478
    %v546 = vpop.f32.mrf.mxu0
    %v547 = vadd.f32 0.0, %v546
    %v548 = vpop.f32.mrf.mxu0
    %549 = vdwg.mxu0
    %v550 = vadd.f32 %v477, %v547
    %v551 = vxor.u32 %v550, 2147483648
    %v552 = vmul.f32 %v551, 1.442695
    %v553 = vpow.pop %v552
    %v554 = vadd.f32 %v553, 1.0
    %v555 = vrcp.pop %v554
    %v556 = vmul.f32 1.0, %v555
    %v557 = vtanh.pop %v550
    %v558 = vmul.f32 %v556, %v462
    %560 = vrot.lane.b32.xlu0 %v557, 64
    %v561 = vpop.permute.xlu0 %560
    %v563 = vmul.f32 %v556, %v561
    %565 = vrot.lane.b32.xlu0 %v563, 32
    %v566 = vpop.permute.xlu0 %565
    %v568 = vadd.f32 %v558, %v566
    %v569 = vtanh.pop %v568
    %571 = vrot.lane.b32.xlu0 %v569, 64
    %v572 = vpop.permute.xlu0 %571
    %v574 = vmul.f32 %v556, %v572
    %576 = vrot.lane.b32.xlu0 %v574, 32
    %v577 = vpop.permute.xlu0 %576
    %579 = vst.msk [vmem:[#allocation3 + $0x10] sm:$0xff] %vm264, %v577
    %s580 = scalar_lea.vmem [#allocation2], 3
    %v581 = vld [vmem:[%s580] ss:$8 sm:$0xf]
    %v582 = vld [vmem:[%s580] ss:$8 sm:$0xf0]
    %v583 = vor.u32 %v581, %v582
    %v584 = vsel %vm264, %v577, 0
    %586 = vmatprep.subr.mxu0 0.0
    %587 = vmatpush1.msra.mxu0 0.0
    %588 = vmatprep.subr.mxu0 0.0
    %589 = vmatpush1.msra.mxu0 0.0
    %590 = vmatprep.subr.mxu0 0.0
    %591 = vmatpush1.msra.mxu0 0.0
    %592 = vmatprep.subr.mxu0 0.0
    %593 = vmatpush1.msra.mxu0 0.0
    %594 = vmatprep.subr.mxu0 0.0
    %595 = vmatpush1.msra.mxu0 0.0
    %596 = vmatprep.subr.mxu0 0.0
    %597 = vmatpush1.msra.mxu0 0.0
    %598 = vmatprep.subr.mxu0 0.0
    %599 = vmatpush1.msra.mxu0 0.0
    %600 = vmatprep.subr.mxu0 0.0
    %601 = vmatpush1.msra.mxu0 0.0
    %602 = vmatprep.subr.mxu0 0.0
    %603 = vmatpush1.msra.mxu0 0.0
    %604 = vmatprep.subr.mxu0 0.0
    %605 = vmatpush1.msra.mxu0 0.0
    %606 = vmatprep.subr.mxu0 0.0
    %607 = vmatpush1.msra.mxu0 0.0
    %608 = vmatprep.subr.mxu0 0.0
    %609 = vmatpush1.msra.mxu0 0.0
    %610 = vmatprep.subr.mxu0 0.0
    %611 = vmatpush1.msra.mxu0 %v107
    %612 = vmatprep.subr.mxu0 0.0
    %613 = vmatpush1.msra.mxu0 %v106
    %614 = vmatprep.subr.mxu0 0.0
    %615 = vmatpush1.msra.mxu0 %v105
    %616 = vmatprep.subr.mxu0 0.0
    %617 = vmatpush1.msra.mxu0 %v104
    %618 = vmatprep.subr.mxu0 0.0
    %619 = vmatpush2.msra.mxu0 0.0
    %620 = vmatprep.subr.mxu0 0.0
    %621 = vmatpush2.msra.mxu0 0.0
    %622 = vmatprep.subr.mxu0 0.0
    %623 = vmatpush2.msra.mxu0 0.0
    %624 = vmatprep.subr.mxu0 0.0
    %625 = vmatpush2.msra.mxu0 0.0
    %626 = vmatprep.subr.mxu0 0.0
    %627 = vmatpush2.msra.mxu0 0.0
    %628 = vmatprep.subr.mxu0 0.0
    %629 = vmatpush2.msra.mxu0 0.0
    %630 = vmatprep.subr.mxu0 0.0
    %631 = vmatpush2.msra.mxu0 0.0
    %632 = vmatprep.subr.mxu0 0.0
    %633 = vmatpush2.msra.mxu0 0.0
    %634 = vmatprep.subr.mxu0 0.0
    %635 = vmatpush2.msra.mxu0 0.0
    %636 = vmatprep.subr.mxu0 0.0
    %637 = vmatpush2.msra.mxu0 0.0
    %638 = vmatprep.subr.mxu0 0.0
    %639 = vmatpush2.msra.mxu0 0.0
    %640 = vmatprep.subr.mxu0 0.0
    %641 = vmatpush2.msra.mxu0 0.0
    %642 = vmatprep.subr.mxu0 0.0
    %643 = vmatpush2.msra.mxu0 0.0
    %644 = vmatprep.subr.mxu0 0.0
    %645 = vmatpush2.msra.mxu0 0.0
    %646 = vmatprep.subr.mxu0 0.0
    %647 = vmatpush2.msra.mxu0 0.0
    %648 = vmatprep.subr.mxu0 0.0
    %649 = vmatpush2.msra.mxu0 0.0
    %650 = vmatprep.mubr.f32.mxu0 0.0
    %651 = vmatmul.mubr.f32.gmra.mxu0 %v584
    %v652 = vpop.f32.mrf.mxu0
    %v653 = vadd.f32 0.0, %v652
    %v654 = vpop.f32.mrf.mxu0
    %655 = vdwg.mxu0
    %v656 = vadd.f32 %v583, %v653
    %v657 = vxor.u32 %v656, 2147483648
    %v658 = vmul.f32 %v657, 1.442695
    %v659 = vpow.pop %v658
    %v660 = vadd.f32 %v659, 1.0
    %v661 = vrcp.pop %v660
    %v662 = vmul.f32 1.0, %v661
    %v663 = vtanh.pop %v656
    %v664 = vmul.f32 %v662, %v568
    %666 = vrot.lane.b32.xlu0 %v663, 64
    %v667 = vpop.permute.xlu0 %666
    %v669 = vmul.f32 %v662, %v667
    %671 = vrot.lane.b32.xlu0 %v669, 32
    %v672 = vpop.permute.xlu0 %671
    %v674 = vadd.f32 %v664, %v672
    %v675 = vtanh.pop %v674
    %677 = vrot.lane.b32.xlu0 %v675, 64
    %v678 = vpop.permute.xlu0 %677
    %v680 = vmul.f32 %v662, %v678
    %682 = vrot.lane.b32.xlu0 %v680, 32
    %v683 = vpop.permute.xlu0 %682
    %685 = vst.msk [vmem:[#allocation3 + $0x18] sm:$0xff] %vm264, %v683
    %s686 = scalar_lea.vmem [#allocation2], 4
    %v687 = vld [vmem:[%s686] ss:$8 sm:$0xf]
    %v688 = vld [vmem:[%s686] ss:$8 sm:$0xf0]
    %v689 = vor.u32 %v687, %v688
    %v690 = vsel %vm264, %v683, 0
    %692 = vmatprep.subr.mxu0 0.0
    %693 = vmatpush1.msra.mxu0 0.0
    %694 = vmatprep.subr.mxu0 0.0
    %695 = vmatpush1.msra.mxu0 0.0
    %696 = vmatprep.subr.mxu0 0.0
    %697 = vmatpush1.msra.mxu0 0.0
    %698 = vmatprep.subr.mxu0 0.0
    %699 = vmatpush1.msra.mxu0 0.0
    %700 = vmatprep.subr.mxu0 0.0
    %701 = vmatpush1.msra.mxu0 0.0
    %702 = vmatprep.subr.mxu0 0.0
    %703 = vmatpush1.msra.mxu0 0.0
    %704 = vmatprep.subr.mxu0 0.0
    %705 = vmatpush1.msra.mxu0 0.0
    %706 = vmatprep.subr.mxu0 0.0
    %707 = vmatpush1.msra.mxu0 0.0
    %708 = vmatprep.subr.mxu0 0.0
    %709 = vmatpush1.msra.mxu0 0.0
    %710 = vmatprep.subr.mxu0 0.0
    %711 = vmatpush1.msra.mxu0 0.0
    %712 = vmatprep.subr.mxu0 0.0
    %713 = vmatpush1.msra.mxu0 0.0
    %714 = vmatprep.subr.mxu0 0.0
    %715 = vmatpush1.msra.mxu0 0.0
    %716 = vmatprep.subr.mxu0 0.0
    %717 = vmatpush1.msra.mxu0 %v107
    %718 = vmatprep.subr.mxu0 0.0
    %719 = vmatpush1.msra.mxu0 %v106
    %720 = vmatprep.subr.mxu0 0.0
    %721 = vmatpush1.msra.mxu0 %v105
    %722 = vmatprep.subr.mxu0 0.0
    %723 = vmatpush1.msra.mxu0 %v104
    %724 = vmatprep.subr.mxu0 0.0
    %725 = vmatpush2.msra.mxu0 0.0
    %726 = vmatprep.subr.mxu0 0.0
    %727 = vmatpush2.msra.mxu0 0.0
    %728 = vmatprep.subr.mxu0 0.0
    %729 = vmatpush2.msra.mxu0 0.0
    %730 = vmatprep.subr.mxu0 0.0
    %731 = vmatpush2.msra.mxu0 0.0
    %732 = vmatprep.subr.mxu0 0.0
    %733 = vmatpush2.msra.mxu0 0.0
    %734 = vmatprep.subr.mxu0 0.0
    %735 = vmatpush2.msra.mxu0 0.0
    %736 = vmatprep.subr.mxu0 0.0
    %737 = vmatpush2.msra.mxu0 0.0
    %738 = vmatprep.subr.mxu0 0.0
    %739 = vmatpush2.msra.mxu0 0.0
    %740 = vmatprep.subr.mxu0 0.0
    %741 = vmatpush2.msra.mxu0 0.0
    %742 = vmatprep.subr.mxu0 0.0
    %743 = vmatpush2.msra.mxu0 0.0
    %744 = vmatprep.subr.mxu0 0.0
    %745 = vmatpush2.msra.mxu0 0.0
    %746 = vmatprep.subr.mxu0 0.0
    %747 = vmatpush2.msra.mxu0 0.0
    %748 = vmatprep.subr.mxu0 0.0
    %749 = vmatpush2.msra.mxu0 0.0
    %750 = vmatprep.subr.mxu0 0.0
    %751 = vmatpush2.msra.mxu0 0.0
    %752 = vmatprep.subr.mxu0 0.0
    %753 = vmatpush2.msra.mxu0 0.0
    %754 = vmatprep.subr.mxu0 0.0
    %755 = vmatpush2.msra.mxu0 0.0
    %756 = vmatprep.mubr.f32.mxu0 0.0
    %757 = vmatmul.mubr.f32.gmra.mxu0 %v690
    %v758 = vpop.f32.mrf.mxu0
    %v759 = vadd.f32 0.0, %v758
    %v760 = vpop.f32.mrf.mxu0
    %761 = vdwg.mxu0
    %v762 = vadd.f32 %v689, %v759
    %v763 = vxor.u32 %v762, 2147483648
    %v764 = vmul.f32 %v763, 1.442695
    %v765 = vpow.pop %v764
    %v766 = vadd.f32 %v765, 1.0
    %v767 = vrcp.pop %v766
    %v768 = vmul.f32 1.0, %v767
    %v769 = vtanh.pop %v762
    %v770 = vmul.f32 %v768, %v674
    %772 = vrot.lane.b32.xlu0 %v769, 64
    %v773 = vpop.permute.xlu0 %772
    %v775 = vmul.f32 %v768, %v773
    %777 = vrot.lane.b32.xlu0 %v775, 32
    %v778 = vpop.permute.xlu0 %777
    %v780 = vadd.f32 %v770, %v778
    %v781 = vtanh.pop %v780
    %783 = vrot.lane.b32.xlu0 %v781, 64
    %v784 = vpop.permute.xlu0 %783
    %v786 = vmul.f32 %v768, %v784
    %788 = vrot.lane.b32.xlu0 %v786, 32
    %v789 = vpop.permute.xlu0 %788
    %791 = vst.msk [vmem:[#allocation3 + $0x20] sm:$0xff] %vm264, %v789
    %s792 = scalar_lea.vmem [#allocation2], 5
    %v793 = vld [vmem:[%s792] ss:$8 sm:$0xf]
    %v794 = vld [vmem:[%s792] ss:$8 sm:$0xf0]
    %v795 = vor.u32 %v793, %v794
    %v796 = vsel %vm264, %v789, 0
    %798 = vmatprep.subr.mxu0 0.0
    %799 = vmatpush1.msra.mxu0 0.0
    %800 = vmatprep.subr.mxu0 0.0
    %801 = vmatpush1.msra.mxu0 0.0
    %802 = vmatprep.subr.mxu0 0.0
    %803 = vmatpush1.msra.mxu0 0.0
    %804 = vmatprep.subr.mxu0 0.0
    %805 = vmatpush1.msra.mxu0 0.0
    %806 = vmatprep.subr.mxu0 0.0
    %807 = vmatpush1.msra.mxu0 0.0
    %808 = vmatprep.subr.mxu0 0.0
    %809 = vmatpush1.msra.mxu0 0.0
    %810 = vmatprep.subr.mxu0 0.0
    %811 = vmatpush1.msra.mxu0 0.0
    %812 = vmatprep.subr.mxu0 0.0
    %813 = vmatpush1.msra.mxu0 0.0
    %814 = vmatprep.subr.mxu0 0.0
    %815 = vmatpush1.msra.mxu0 0.0
    %816 = vmatprep.subr.mxu0 0.0
    %817 = vmatpush1.msra.mxu0 0.0
    %818 = vmatprep.subr.mxu0 0.0
    %819 = vmatpush1.msra.mxu0 0.0
    %820 = vmatprep.subr.mxu0 0.0
    %821 = vmatpush1.msra.mxu0 0.0
    %822 = vmatprep.subr.mxu0 0.0
    %823 = vmatpush1.msra.mxu0 %v107
    %824 = vmatprep.subr.mxu0 0.0
    %825 = vmatpush1.msra.mxu0 %v106
    %826 = vmatprep.subr.mxu0 0.0
    %827 = vmatpush1.msra.mxu0 %v105
    %828 = vmatprep.subr.mxu0 0.0
    %829 = vmatpush1.msra.mxu0 %v104
    %830 = vmatprep.subr.mxu0 0.0
    %831 = vmatpush2.msra.mxu0 0.0
    %832 = vmatprep.subr.mxu0 0.0
    %833 = vmatpush2.msra.mxu0 0.0
    %834 = vmatprep.subr.mxu0 0.0
    %835 = vmatpush2.msra.mxu0 0.0
    %836 = vmatprep.subr.mxu0 0.0
    %837 = vmatpush2.msra.mxu0 0.0
    %838 = vmatprep.subr.mxu0 0.0
    %839 = vmatpush2.msra.mxu0 0.0
    %840 = vmatprep.subr.mxu0 0.0
    %841 = vmatpush2.msra.mxu0 0.0
    %842 = vmatprep.subr.mxu0 0.0
    %843 = vmatpush2.msra.mxu0 0.0
    %844 = vmatprep.subr.mxu0 0.0
    %845 = vmatpush2.msra.mxu0 0.0
    %846 = vmatprep.subr.mxu0 0.0
    %847 = vmatpush2.msra.mxu0 0.0
    %848 = vmatprep.subr.mxu0 0.0
    %849 = vmatpush2.msra.mxu0 0.0
    %850 = vmatprep.subr.mxu0 0.0
    %851 = vmatpush2.msra.mxu0 0.0
    %852 = vmatprep.subr.mxu0 0.0
    %853 = vmatpush2.msra.mxu0 0.0
    %854 = vmatprep.subr.mxu0 0.0
    %855 = vmatpush2.msra.mxu0 0.0
    %856 = vmatprep.subr.mxu0 0.0
    %857 = vmatpush2.msra.mxu0 0.0
    %858 = vmatprep.subr.mxu0 0.0
    %859 = vmatpush2.msra.mxu0 0.0
    %860 = vmatprep.subr.mxu0 0.0
    %861 = vmatpush2.msra.mxu0 0.0
    %862 = vmatprep.mubr.f32.mxu0 0.0
    %863 = vmatmul.mubr.f32.gmra.mxu0 %v796
    %v864 = vpop.f32.mrf.mxu0
    %v865 = vadd.f32 0.0, %v864
    %v866 = vpop.f32.mrf.mxu0
    %867 = vdwg.mxu0
    %v868 = vadd.f32 %v795, %v865
    %v869 = vxor.u32 %v868, 2147483648
    %v870 = vmul.f32 %v869, 1.442695
    %v871 = vpow.pop %v870
    %v872 = vadd.f32 %v871, 1.0
    %v873 = vrcp.pop %v872
    %v874 = vmul.f32 1.0, %v873
    %v875 = vtanh.pop %v868
    %v876 = vmul.f32 %v874, %v780
    %878 = vrot.lane.b32.xlu0 %v875, 64
    %v879 = vpop.permute.xlu0 %878
    %v881 = vmul.f32 %v874, %v879
    %883 = vrot.lane.b32.xlu0 %v881, 32
    %v884 = vpop.permute.xlu0 %883
    %v886 = vadd.f32 %v876, %v884
    %v887 = vtanh.pop %v886
    %889 = vrot.lane.b32.xlu0 %v887, 64
    %v890 = vpop.permute.xlu0 %889
    %v892 = vmul.f32 %v874, %v890
    %894 = vrot.lane.b32.xlu0 %v892, 32
    %v895 = vpop.permute.xlu0 %894
    %897 = vst.msk [vmem:[#allocation3 + $0x28] sm:$0xff] %vm264, %v895
    %s898 = scalar_lea.vmem [#allocation2], 6
    %v899 = vld [vmem:[%s898] ss:$8 sm:$0xf]
    %v900 = vld [vmem:[%s898] ss:$8 sm:$0xf0]
    %v901 = vor.u32 %v899, %v900
    %v902 = vsel %vm264, %v895, 0
    %904 = vmatprep.subr.mxu0 0.0
    %905 = vmatpush1.msra.mxu0 0.0
    %906 = vmatprep.subr.mxu0 0.0
    %907 = vmatpush1.msra.mxu0 0.0
    %908 = vmatprep.subr.mxu0 0.0
    %909 = vmatpush1.msra.mxu0 0.0
    %910 = vmatprep.subr.mxu0 0.0
    %911 = vmatpush1.msra.mxu0 0.0
    %912 = vmatprep.subr.mxu0 0.0
    %913 = vmatpush1.msra.mxu0 0.0
    %914 = vmatprep.subr.mxu0 0.0
    %915 = vmatpush1.msra.mxu0 0.0
    %916 = vmatprep.subr.mxu0 0.0
    %917 = vmatpush1.msra.mxu0 0.0
    %918 = vmatprep.subr.mxu0 0.0
    %919 = vmatpush1.msra.mxu0 0.0
    %920 = vmatprep.subr.mxu0 0.0
    %921 = vmatpush1.msra.mxu0 0.0
    %922 = vmatprep.subr.mxu0 0.0
    %923 = vmatpush1.msra.mxu0 0.0
    %924 = vmatprep.subr.mxu0 0.0
    %925 = vmatpush1.msra.mxu0 0.0
    %926 = vmatprep.subr.mxu0 0.0
    %927 = vmatpush1.msra.mxu0 0.0
    %928 = vmatprep.subr.mxu0 0.0
    %929 = vmatpush1.msra.mxu0 %v107
    %930 = vmatprep.subr.mxu0 0.0
    %931 = vmatpush1.msra.mxu0 %v106
    %932 = vmatprep.subr.mxu0 0.0
    %933 = vmatpush1.msra.mxu0 %v105
    %934 = vmatprep.subr.mxu0 0.0
    %935 = vmatpush1.msra.mxu0 %v104
    %936 = vmatprep.subr.mxu0 0.0
    %937 = vmatpush2.msra.mxu0 0.0
    %938 = vmatprep.subr.mxu0 0.0
    %939 = vmatpush2.msra.mxu0 0.0
    %940 = vmatprep.subr.mxu0 0.0
    %941 = vmatpush2.msra.mxu0 0.0
    %942 = vmatprep.subr.mxu0 0.0
    %943 = vmatpush2.msra.mxu0 0.0
    %944 = vmatprep.subr.mxu0 0.0
    %945 = vmatpush2.msra.mxu0 0.0
    %946 = vmatprep.subr.mxu0 0.0
    %947 = vmatpush2.msra.mxu0 0.0
    %948 = vmatprep.subr.mxu0 0.0
    %949 = vmatpush2.msra.mxu0 0.0
    %950 = vmatprep.subr.mxu0 0.0
    %951 = vmatpush2.msra.mxu0 0.0
    %952 = vmatprep.subr.mxu0 0.0
    %953 = vmatpush2.msra.mxu0 0.0
    %954 = vmatprep.subr.mxu0 0.0
    %955 = vmatpush2.msra.mxu0 0.0
    %956 = vmatprep.subr.mxu0 0.0
    %957 = vmatpush2.msra.mxu0 0.0
    %958 = vmatprep.subr.mxu0 0.0
    %959 = vmatpush2.msra.mxu0 0.0
    %960 = vmatprep.subr.mxu0 0.0
    %961 = vmatpush2.msra.mxu0 0.0
    %962 = vmatprep.subr.mxu0 0.0
    %963 = vmatpush2.msra.mxu0 0.0
    %964 = vmatprep.subr.mxu0 0.0
    %965 = vmatpush2.msra.mxu0 0.0
    %966 = vmatprep.subr.mxu0 0.0
    %967 = vmatpush2.msra.mxu0 0.0
    %968 = vmatprep.mubr.f32.mxu0 0.0
    %969 = vmatmul.mubr.f32.gmra.mxu0 %v902
    %v970 = vpop.f32.mrf.mxu0
    %v971 = vadd.f32 0.0, %v970
    %v972 = vpop.f32.mrf.mxu0
    %973 = vdwg.mxu0
    %v974 = vadd.f32 %v901, %v971
    %v975 = vxor.u32 %v974, 2147483648
    %v976 = vmul.f32 %v975, 1.442695
    %v977 = vpow.pop %v976
    %v978 = vadd.f32 %v977, 1.0
    %v979 = vrcp.pop %v978
    %v980 = vmul.f32 1.0, %v979
    %v981 = vtanh.pop %v974
    %v982 = vmul.f32 %v980, %v886
    %984 = vrot.lane.b32.xlu0 %v981, 64
    %v985 = vpop.permute.xlu0 %984
    %v987 = vmul.f32 %v980, %v985
    %989 = vrot.lane.b32.xlu0 %v987, 32
    %v990 = vpop.permute.xlu0 %989
    %v992 = vadd.f32 %v982, %v990
    %v993 = vtanh.pop %v992
    %995 = vrot.lane.b32.xlu0 %v993, 64
    %v996 = vpop.permute.xlu0 %995
    %v998 = vmul.f32 %v980, %v996
    %1000 = vrot.lane.b32.xlu0 %v998, 32
    %v1001 = vpop.permute.xlu0 %1000
    %1003 = vst.msk [vmem:[#allocation3 + $0x30] sm:$0xff] %vm264, %v1001
    %s1004 = scalar_lea.vmem [#allocation2], 7
    %v1005 = vld [vmem:[%s1004] ss:$8 sm:$0xf]
    %v1006 = vld [vmem:[%s1004] ss:$8 sm:$0xf0]
    %v1007 = vor.u32 %v1005, %v1006
    %v1008 = vsel %vm264, %v1001, 0
    %1010 = vmatprep.subr.mxu0 0.0
    %1011 = vmatpush1.msra.mxu0 0.0
    %1012 = vmatprep.subr.mxu0 0.0
    %1013 = vmatpush1.msra.mxu0 0.0
    %1014 = vmatprep.subr.mxu0 0.0
    %1015 = vmatpush1.msra.mxu0 0.0
    %1016 = vmatprep.subr.mxu0 0.0
    %1017 = vmatpush1.msra.mxu0 0.0
    %1018 = vmatprep.subr.mxu0 0.0
    %1019 = vmatpush1.msra.mxu0 0.0
    %1020 = vmatprep.subr.mxu0 0.0
    %1021 = vmatpush1.msra.mxu0 0.0
    %1022 = vmatprep.subr.mxu0 0.0
    %1023 = vmatpush1.msra.mxu0 0.0
    %1024 = vmatprep.subr.mxu0 0.0
    %1025 = vmatpush1.msra.mxu0 0.0
    %1026 = vmatprep.subr.mxu0 0.0
    %1027 = vmatpush1.msra.mxu0 0.0
    %1028 = vmatprep.subr.mxu0 0.0
    %1029 = vmatpush1.msra.mxu0 0.0
    %1030 = vmatprep.subr.mxu0 0.0
    %1031 = vmatpush1.msra.mxu0 0.0
    %1032 = vmatprep.subr.mxu0 0.0
    %1033 = vmatpush1.msra.mxu0 0.0
    %1034 = vmatprep.subr.mxu0 0.0
    %1035 = vmatpush1.msra.mxu0 %v107
    %1036 = vmatprep.subr.mxu0 0.0
    %1037 = vmatpush1.msra.mxu0 %v106
    %1038 = vmatprep.subr.mxu0 0.0
    %1039 = vmatpush1.msra.mxu0 %v105
    %1040 = vmatprep.subr.mxu0 0.0
    %1041 = vmatpush1.msra.mxu0 %v104
    %1042 = vmatprep.subr.mxu0 0.0
    %1043 = vmatpush2.msra.mxu0 0.0
    %1044 = vmatprep.subr.mxu0 0.0
    %1045 = vmatpush2.msra.mxu0 0.0
    %1046 = vmatprep.subr.mxu0 0.0
    %1047 = vmatpush2.msra.mxu0 0.0
    %1048 = vmatprep.subr.mxu0 0.0
    %1049 = vmatpush2.msra.mxu0 0.0
    %1050 = vmatprep.subr.mxu0 0.0
    %1051 = vmatpush2.msra.mxu0 0.0
    %1052 = vmatprep.subr.mxu0 0.0
    %1053 = vmatpush2.msra.mxu0 0.0
    %1054 = vmatprep.subr.mxu0 0.0
    %1055 = vmatpush2.msra.mxu0 0.0
    %1056 = vmatprep.subr.mxu0 0.0
    %1057 = vmatpush2.msra.mxu0 0.0
    %1058 = vmatprep.subr.mxu0 0.0
    %1059 = vmatpush2.msra.mxu0 0.0
    %1060 = vmatprep.subr.mxu0 0.0
    %1061 = vmatpush2.msra.mxu0 0.0
    %1062 = vmatprep.subr.mxu0 0.0
    %1063 = vmatpush2.msra.mxu0 0.0
    %1064 = vmatprep.subr.mxu0 0.0
    %1065 = vmatpush2.msra.mxu0 0.0
    %1066 = vmatprep.subr.mxu0 0.0
    %1067 = vmatpush2.msra.mxu0 0.0
    %1068 = vmatprep.subr.mxu0 0.0
    %1069 = vmatpush2.msra.mxu0 0.0
    %1070 = vmatprep.subr.mxu0 0.0
    %1071 = vmatpush2.msra.mxu0 0.0
    %1072 = vmatprep.subr.mxu0 0.0
    %1073 = vmatpush2.msra.mxu0 0.0
    %1074 = vmatprep.mubr.f32.mxu0 0.0
    %1075 = vmatmul.mubr.f32.gmra.mxu0 %v1008
    %v1076 = vpop.f32.mrf.mxu0
    %v1077 = vadd.f32 0.0, %v1076
    %v1078 = vpop.f32.mrf.mxu0
    %1079 = vdwg.mxu0
    %v1080 = vadd.f32 %v1007, %v1077
    %v1081 = vxor.u32 %v1080, 2147483648
    %v1082 = vmul.f32 %v1081, 1.442695
    %v1083 = vpow.pop %v1082
    %v1084 = vadd.f32 %v1083, 1.0
    %v1085 = vrcp.pop %v1084
    %v1086 = vmul.f32 1.0, %v1085
    %v1087 = vtanh.pop %v1080
    %v1088 = vmul.f32 %v1086, %v992
    %1090 = vrot.lane.b32.xlu0 %v1087, 64
    %v1091 = vpop.permute.xlu0 %1090
    %v1093 = vmul.f32 %v1086, %v1091
    %1095 = vrot.lane.b32.xlu0 %v1093, 32
    %v1096 = vpop.permute.xlu0 %1095
    %v1098 = vadd.f32 %v1088, %v1096
    %v1099 = vtanh.pop %v1098
    %1101 = vrot.lane.b32.xlu0 %v1099, 64
    %v1102 = vpop.permute.xlu0 %1101
    %v1104 = vmul.f32 %v1086, %v1102
    %1106 = vrot.lane.b32.xlu0 %v1104, 32
    %v1107 = vpop.permute.xlu0 %1106
    %1109 = vst.msk [vmem:[#allocation3 + $0x38] sm:$0xff] %vm264, %v1107
    %v1110 = vld [vmem:[#allocation10] sm:$0xff]
    %v1111 = vld [vmem:[#allocation10 + $0x8] sm:$0xff]
    %v1112 = vld [vmem:[#allocation10 + $0x10] sm:$0xff]
    %v1113 = vld [vmem:[#allocation10 + $0x18] sm:$0xff]
    %v1114 = vld [vmem:[#allocation12] sm:$0xff]
    %v1115 = vld [vmem:[#allocation12 + $0x8] sm:$0xff]
    %v1116 = vld [vmem:[#allocation12 + $0x10] sm:$0xff]
    %v1117 = vld [vmem:[#allocation12 + $0x18] sm:$0xff]
    %v1118 = vld [vmem:[%s6] sm:$0x1]
    %v1119 = vld [vmem:[#allocation3] sm:$0xff]
    %v1120 = vld [vmem:[#allocation3 + $0x8] sm:$0xff]
    %v1121 = vld [vmem:[#allocation3 + $0x10] sm:$0xff]
    %v1122 = vld [vmem:[#allocation3 + $0x18] sm:$0xff]
    %v1123 = vld [vmem:[#allocation3 + $0x20] sm:$0xff]
    %v1124 = vld [vmem:[#allocation3 + $0x28] sm:$0xff]
    %v1125 = vld [vmem:[#allocation3 + $0x30] sm:$0xff]
    %v1126 = vld [vmem:[#allocation3 + $0x38] sm:$0xff]
    %v1128 = vlaneseq
    %v1129 = vshrl.u32 %v1128, 7
    %v1130 = vsub.s32 0, %v1129
    %v1131 = vrot.slane %v1118, %v1130
    %v1134 = vsel %vm264, %v1119, 0
    %v1137 = vsel %vm264, %v1120, 0
    %v1140 = vsel %vm264, %v1121, 0
    %v1143 = vsel %vm264, %v1122, 0
    %v1146 = vsel %vm264, %v1123, 0
    %v1149 = vsel %vm264, %v1124, 0
    %v1152 = vsel %vm264, %v1125, 0
    %v1155 = vsel %vm264, %v1126, 0
    %1157 = vmatprep.subr.mxu0 0.0
    %1158 = vmatpush1.msra.mxu0 0.0
    %1159 = vmatprep.subr.mxu0 0.0
    %1160 = vmatpush1.msra.mxu0 0.0
    %1161 = vmatprep.subr.mxu0 0.0
    %1162 = vmatpush1.msra.mxu0 0.0
    %1163 = vmatprep.subr.mxu0 0.0
    %1164 = vmatpush1.msra.mxu0 0.0
    %1165 = vmatprep.subr.mxu0 0.0
    %1166 = vmatpush1.msra.mxu0 0.0
    %1167 = vmatprep.subr.mxu0 0.0
    %1168 = vmatpush1.msra.mxu0 0.0
    %1169 = vmatprep.subr.mxu0 0.0
    %1170 = vmatpush1.msra.mxu0 0.0
    %1171 = vmatprep.subr.mxu0 0.0
    %1172 = vmatpush1.msra.mxu0 0.0
    %1173 = vmatprep.subr.mxu0 0.0
    %1174 = vmatpush1.msra.mxu0 0.0
    %1175 = vmatprep.subr.mxu0 0.0
    %1176 = vmatpush1.msra.mxu0 0.0
    %1177 = vmatprep.subr.mxu0 0.0
    %1178 = vmatpush1.msra.mxu0 0.0
    %1179 = vmatprep.subr.mxu0 0.0
    %1180 = vmatpush1.msra.mxu0 0.0
    %1181 = vmatprep.subr.mxu0 0.0
    %1182 = vmatpush1.msra.mxu0 %v1113
    %1183 = vmatprep.subr.mxu0 0.0
    %1184 = vmatpush1.msra.mxu0 %v1112
    %1185 = vmatprep.subr.mxu0 0.0
    %1186 = vmatpush1.msra.mxu0 %v1111
    %1187 = vmatprep.subr.mxu0 0.0
    %1188 = vmatpush1.msra.mxu0 %v1110
    %1189 = vmatprep.subr.mxu0 0.0
    %1190 = vmatpush2.msra.mxu0 0.0
    %1191 = vmatprep.subr.mxu0 0.0
    %1192 = vmatpush2.msra.mxu0 0.0
    %1193 = vmatprep.subr.mxu0 0.0
    %1194 = vmatpush2.msra.mxu0 0.0
    %1195 = vmatprep.subr.mxu0 0.0
    %1196 = vmatpush2.msra.mxu0 0.0
    %1197 = vmatprep.subr.mxu0 0.0
    %1198 = vmatpush2.msra.mxu0 0.0
    %1199 = vmatprep.subr.mxu0 0.0
    %1200 = vmatpush2.msra.mxu0 0.0
    %1201 = vmatprep.subr.mxu0 0.0
    %1202 = vmatpush2.msra.mxu0 0.0
    %1203 = vmatprep.subr.mxu0 0.0
    %1204 = vmatpush2.msra.mxu0 0.0
    %1205 = vmatprep.subr.mxu0 0.0
    %1206 = vmatpush2.msra.mxu0 0.0
    %1207 = vmatprep.subr.mxu0 0.0
    %1208 = vmatpush2.msra.mxu0 0.0
    %1209 = vmatprep.subr.mxu0 0.0
    %1210 = vmatpush2.msra.mxu0 0.0
    %1211 = vmatprep.subr.mxu0 0.0
    %1212 = vmatpush2.msra.mxu0 0.0
    %1213 = vmatprep.subr.mxu0 0.0
    %1214 = vmatpush2.msra.mxu0 0.0
    %1215 = vmatprep.subr.mxu0 0.0
    %1216 = vmatpush2.msra.mxu0 0.0
    %1217 = vmatprep.subr.mxu0 0.0
    %1218 = vmatpush2.msra.mxu0 0.0
    %1219 = vmatprep.subr.mxu0 0.0
    %1220 = vmatpush2.msra.mxu0 0.0
    %1221 = vmatprep.mubr.f32.mxu0 0.0
    %1222 = vmatmul.mubr.f32.gmra.mxu0 %v1134
    %v1223 = vpop.f32.mrf.mxu0
    %v1224 = vadd.f32 %v1131, %v1223
    %v1225 = vpop.f32.mrf.mxu0
    %1226 = vmatprep.mubr.f32.mxu0 0.0
    %1227 = vmatmul.mubr.f32.gmra.mxu0 %v1137
    %v1228 = vpop.f32.mrf.mxu0
    %v1229 = vadd.f32 %v1131, %v1228
    %v1230 = vpop.f32.mrf.mxu0
    %1231 = vmatprep.mubr.f32.mxu0 0.0
    %1232 = vmatmul.mubr.f32.gmra.mxu0 %v1140
    %v1233 = vpop.f32.mrf.mxu0
    %v1234 = vadd.f32 %v1131, %v1233
    %v1235 = vpop.f32.mrf.mxu0
    %1236 = vmatprep.mubr.f32.mxu0 0.0
    %1237 = vmatmul.mubr.f32.gmra.mxu0 %v1143
    %v1238 = vpop.f32.mrf.mxu0
    %v1239 = vadd.f32 %v1131, %v1238
    %v1240 = vpop.f32.mrf.mxu0
    %1241 = vmatprep.mubr.f32.mxu0 0.0
    %1242 = vmatmul.mubr.f32.gmra.mxu0 %v1146
    %v1243 = vpop.f32.mrf.mxu0
    %v1244 = vadd.f32 %v1131, %v1243
    %v1245 = vpop.f32.mrf.mxu0
    %1246 = vmatprep.mubr.f32.mxu0 0.0
    %1247 = vmatmul.mubr.f32.gmra.mxu0 %v1149
    %v1248 = vpop.f32.mrf.mxu0
    %v1249 = vadd.f32 %v1131, %v1248
    %v1250 = vpop.f32.mrf.mxu0
    %1251 = vmatprep.mubr.f32.mxu0 0.0
    %1252 = vmatmul.mubr.f32.gmra.mxu0 %v1152
    %v1253 = vpop.f32.mrf.mxu0
    %v1254 = vadd.f32 %v1131, %v1253
    %v1255 = vpop.f32.mrf.mxu0
    %1256 = vmatprep.mubr.f32.mxu0 0.0
    %1257 = vmatmul.mubr.f32.gmra.mxu0 %v1155
    %v1258 = vpop.f32.mrf.mxu0
    %v1259 = vadd.f32 %v1131, %v1258
    %v1260 = vpop.f32.mrf.mxu0
    %1261 = vdwg.mxu0
    %1262 = vst [vmem:[#allocation2] sm:$0xff] %v1224
    %1263 = vst [vmem:[#allocation2 + $0x8] sm:$0xff] %v1229
    %1264 = vst [vmem:[#allocation2 + $0x10] sm:$0xff] %v1234
    %1265 = vst [vmem:[#allocation2 + $0x18] sm:$0xff] %v1239
    %1266 = vst [vmem:[#allocation2 + $0x20] sm:$0xff] %v1244
    %1267 = vst [vmem:[#allocation2 + $0x28] sm:$0xff] %v1249
    %1268 = vst [vmem:[#allocation2 + $0x30] sm:$0xff] %v1254
    %1269 = vst [vmem:[#allocation2 + $0x38] sm:$0xff] %v1259
    %v1270 = vld [vmem:[#allocation2] sm:$0xff]
    %1271 = vmatprep.subr.mxu0 0.0
    %1272 = vmatpush1.msra.mxu0 0.0
    %1273 = vmatprep.subr.mxu0 0.0
    %1274 = vmatpush1.msra.mxu0 0.0
    %1275 = vmatprep.subr.mxu0 0.0
    %1276 = vmatpush1.msra.mxu0 0.0
    %1277 = vmatprep.subr.mxu0 0.0
    %1278 = vmatpush1.msra.mxu0 0.0
    %1279 = vmatprep.subr.mxu0 0.0
    %1280 = vmatpush1.msra.mxu0 0.0
    %1281 = vmatprep.subr.mxu0 0.0
    %1282 = vmatpush1.msra.mxu0 0.0
    %1283 = vmatprep.subr.mxu0 0.0
    %1284 = vmatpush1.msra.mxu0 0.0
    %1285 = vmatprep.subr.mxu0 0.0
    %1286 = vmatpush1.msra.mxu0 0.0
    %1287 = vmatprep.subr.mxu0 0.0
    %1288 = vmatpush1.msra.mxu0 0.0
    %1289 = vmatprep.subr.mxu0 0.0
    %1290 = vmatpush1.msra.mxu0 0.0
    %1291 = vmatprep.subr.mxu0 0.0
    %1292 = vmatpush1.msra.mxu0 0.0
    %1293 = vmatprep.subr.mxu0 0.0
    %1294 = vmatpush1.msra.mxu0 0.0
    %1295 = vmatprep.subr.mxu0 0.0
    %1296 = vmatpush1.msra.mxu0 %v1117
    %1297 = vmatprep.subr.mxu0 0.0
    %1298 = vmatpush1.msra.mxu0 %v1116
    %1299 = vmatprep.subr.mxu0 0.0
    %1300 = vmatpush1.msra.mxu0 %v1115
    %1301 = vmatprep.subr.mxu0 0.0
    %1302 = vmatpush1.msra.mxu0 %v1114
    %1303 = vmatprep.subr.mxu0 0.0
    %1304 = vmatpush2.msra.mxu0 0.0
    %1305 = vmatprep.subr.mxu0 0.0
    %1306 = vmatpush2.msra.mxu0 0.0
    %1307 = vmatprep.subr.mxu0 0.0
    %1308 = vmatpush2.msra.mxu0 0.0
    %1309 = vmatprep.subr.mxu0 0.0
    %1310 = vmatpush2.msra.mxu0 0.0
    %1311 = vmatprep.subr.mxu0 0.0
    %1312 = vmatpush2.msra.mxu0 0.0
    %1313 = vmatprep.subr.mxu0 0.0
    %1314 = vmatpush2.msra.mxu0 0.0
    %1315 = vmatprep.subr.mxu0 0.0
    %1316 = vmatpush2.msra.mxu0 0.0
    %1317 = vmatprep.subr.mxu0 0.0
    %1318 = vmatpush2.msra.mxu0 0.0
    %1319 = vmatprep.subr.mxu0 0.0
    %1320 = vmatpush2.msra.mxu0 0.0
    %1321 = vmatprep.subr.mxu0 0.0
    %1322 = vmatpush2.msra.mxu0 0.0
    %1323 = vmatprep.subr.mxu0 0.0
    %1324 = vmatpush2.msra.mxu0 0.0
    %1325 = vmatprep.subr.mxu0 0.0
    %1326 = vmatpush2.msra.mxu0 0.0
    %1327 = vmatprep.subr.mxu0 0.0
    %1328 = vmatpush2.msra.mxu0 0.0
    %1329 = vmatprep.subr.mxu0 0.0
    %1330 = vmatpush2.msra.mxu0 0.0
    %1331 = vmatprep.subr.mxu0 0.0
    %1332 = vmatpush2.msra.mxu0 0.0
    %1333 = vmatprep.subr.mxu0 0.0
    %1334 = vmatpush2.msra.mxu0 0.0
    %1335 = vmatprep.mubr.f32.mxu0 0.0
    %1336 = vmatmul.mubr.f32.gmra.mxu0 %v266
    %v1337 = vpop.f32.mrf.mxu0
    %v1338 = vadd.f32 0.0, %v1337
    %v1339 = vpop.f32.mrf.mxu0
    %1340 = vdwg.mxu0
    %v1341 = vadd.f32 %v1270, %v1338
    %v1342 = vxor.u32 %v1341, 2147483648
    %v1343 = vmul.f32 %v1342, 1.442695
    %v1344 = vpow.pop %v1343
    %v1345 = vadd.f32 %v1344, 1.0
    %v1346 = vrcp.pop %v1345
    %v1347 = vmul.f32 1.0, %v1346
    %v1348 = vtanh.pop %v1341
    %v1349 = vmul.f32 %v1347, 0.0
    %1351 = vrot.lane.b32.xlu0 %v1348, 64
    %v1352 = vpop.permute.xlu0 %1351
    %v1354 = vmul.f32 %v1347, %v1352
    %1356 = vrot.lane.b32.xlu0 %v1354, 32
    %v1357 = vpop.permute.xlu0 %1356
    %v1359 = vadd.f32 %v1349, %v1357
    %v1360 = vtanh.pop %v1359
    %1362 = vrot.lane.b32.xlu0 %v1360, 64
    %v1363 = vpop.permute.xlu0 %1362
    %v1365 = vmul.f32 %v1347, %v1363
    %v1366 = vld [vmem:[#allocation2 + $0x8] sm:$0xff]
    %1368 = vrot.lane.b32.xlu0 %v1365, 32
    %v1369 = vpop.permute.xlu0 %1368
    %v1370 = vsel %vm264, %v1369, 0
    %1372 = vmatprep.subr.mxu0 0.0
    %1373 = vmatpush1.msra.mxu0 0.0
    %1374 = vmatprep.subr.mxu0 0.0
    %1375 = vmatpush1.msra.mxu0 0.0
    %1376 = vmatprep.subr.mxu0 0.0
    %1377 = vmatpush1.msra.mxu0 0.0
    %1378 = vmatprep.subr.mxu0 0.0
    %1379 = vmatpush1.msra.mxu0 0.0
    %1380 = vmatprep.subr.mxu0 0.0
    %1381 = vmatpush1.msra.mxu0 0.0
    %1382 = vmatprep.subr.mxu0 0.0
    %1383 = vmatpush1.msra.mxu0 0.0
    %1384 = vmatprep.subr.mxu0 0.0
    %1385 = vmatpush1.msra.mxu0 0.0
    %1386 = vmatprep.subr.mxu0 0.0
    %1387 = vmatpush1.msra.mxu0 0.0
    %1388 = vmatprep.subr.mxu0 0.0
    %1389 = vmatpush1.msra.mxu0 0.0
    %1390 = vmatprep.subr.mxu0 0.0
    %1391 = vmatpush1.msra.mxu0 0.0
    %1392 = vmatprep.subr.mxu0 0.0
    %1393 = vmatpush1.msra.mxu0 0.0
    %1394 = vmatprep.subr.mxu0 0.0
    %1395 = vmatpush1.msra.mxu0 0.0
    %1396 = vmatprep.subr.mxu0 0.0
    %1397 = vmatpush1.msra.mxu0 %v1117
    %1398 = vmatprep.subr.mxu0 0.0
    %1399 = vmatpush1.msra.mxu0 %v1116
    %1400 = vmatprep.subr.mxu0 0.0
    %1401 = vmatpush1.msra.mxu0 %v1115
    %1402 = vmatprep.subr.mxu0 0.0
    %1403 = vmatpush1.msra.mxu0 %v1114
    %1404 = vmatprep.subr.mxu0 0.0
    %1405 = vmatpush2.msra.mxu0 0.0
    %1406 = vmatprep.subr.mxu0 0.0
    %1407 = vmatpush2.msra.mxu0 0.0
    %1408 = vmatprep.subr.mxu0 0.0
    %1409 = vmatpush2.msra.mxu0 0.0
    %1410 = vmatprep.subr.mxu0 0.0
    %1411 = vmatpush2.msra.mxu0 0.0
    %1412 = vmatprep.subr.mxu0 0.0
    %1413 = vmatpush2.msra.mxu0 0.0
    %1414 = vmatprep.subr.mxu0 0.0
    %1415 = vmatpush2.msra.mxu0 0.0
    %1416 = vmatprep.subr.mxu0 0.0
    %1417 = vmatpush2.msra.mxu0 0.0
    %1418 = vmatprep.subr.mxu0 0.0
    %1419 = vmatpush2.msra.mxu0 0.0
    %1420 = vmatprep.subr.mxu0 0.0
    %1421 = vmatpush2.msra.mxu0 0.0
    %1422 = vmatprep.subr.mxu0 0.0
    %1423 = vmatpush2.msra.mxu0 0.0
    %1424 = vmatprep.subr.mxu0 0.0
    %1425 = vmatpush2.msra.mxu0 0.0
    %1426 = vmatprep.subr.mxu0 0.0
    %1427 = vmatpush2.msra.mxu0 0.0
    %1428 = vmatprep.subr.mxu0 0.0
    %1429 = vmatpush2.msra.mxu0 0.0
    %1430 = vmatprep.subr.mxu0 0.0
    %1431 = vmatpush2.msra.mxu0 0.0
    %1432 = vmatprep.subr.mxu0 0.0
    %1433 = vmatpush2.msra.mxu0 0.0
    %1434 = vmatprep.subr.mxu0 0.0
    %1435 = vmatpush2.msra.mxu0 0.0
    %1436 = vmatprep.mubr.f32.mxu0 0.0
    %1437 = vmatmul.mubr.f32.gmra.mxu0 %v1370
    %v1438 = vpop.f32.mrf.mxu0
    %v1439 = vadd.f32 0.0, %v1438
    %v1440 = vpop.f32.mrf.mxu0
    %1441 = vdwg.mxu0
    %v1442 = vadd.f32 %v1366, %v1439
    %v1443 = vxor.u32 %v1442, 2147483648
    %v1444 = vmul.f32 %v1443, 1.442695
    %v1445 = vpow.pop %v1444
    %v1446 = vadd.f32 %v1445, 1.0
    %v1447 = vrcp.pop %v1446
    %v1448 = vmul.f32 1.0, %v1447
    %v1449 = vtanh.pop %v1442
    %v1450 = vmul.f32 %v1448, %v1359
    %1452 = vrot.lane.b32.xlu0 %v1449, 64
    %v1453 = vpop.permute.xlu0 %1452
    %v1455 = vmul.f32 %v1448, %v1453
    %1457 = vrot.lane.b32.xlu0 %v1455, 32
    %v1458 = vpop.permute.xlu0 %1457
    %v1460 = vadd.f32 %v1450, %v1458
    %v1461 = vtanh.pop %v1460
    %1463 = vrot.lane.b32.xlu0 %v1461, 64
    %v1464 = vpop.permute.xlu0 %1463
    %v1466 = vmul.f32 %v1448, %v1464
    %v1467 = vld [vmem:[#allocation2 + $0x10] sm:$0xff]
    %1469 = vrot.lane.b32.xlu0 %v1466, 32
    %v1470 = vpop.permute.xlu0 %1469
    %v1471 = vsel %vm264, %v1470, 0
    %1473 = vmatprep.subr.mxu0 0.0
    %1474 = vmatpush1.msra.mxu0 0.0
    %1475 = vmatprep.subr.mxu0 0.0
    %1476 = vmatpush1.msra.mxu0 0.0
    %1477 = vmatprep.subr.mxu0 0.0
    %1478 = vmatpush1.msra.mxu0 0.0
    %1479 = vmatprep.subr.mxu0 0.0
    %1480 = vmatpush1.msra.mxu0 0.0
    %1481 = vmatprep.subr.mxu0 0.0
    %1482 = vmatpush1.msra.mxu0 0.0
    %1483 = vmatprep.subr.mxu0 0.0
    %1484 = vmatpush1.msra.mxu0 0.0
    %1485 = vmatprep.subr.mxu0 0.0
    %1486 = vmatpush1.msra.mxu0 0.0
    %1487 = vmatprep.subr.mxu0 0.0
    %1488 = vmatpush1.msra.mxu0 0.0
    %1489 = vmatprep.subr.mxu0 0.0
    %1490 = vmatpush1.msra.mxu0 0.0
    %1491 = vmatprep.subr.mxu0 0.0
    %1492 = vmatpush1.msra.mxu0 0.0
    %1493 = vmatprep.subr.mxu0 0.0
    %1494 = vmatpush1.msra.mxu0 0.0
    %1495 = vmatprep.subr.mxu0 0.0
    %1496 = vmatpush1.msra.mxu0 0.0
    %1497 = vmatprep.subr.mxu0 0.0
    %1498 = vmatpush1.msra.mxu0 %v1117
    %1499 = vmatprep.subr.mxu0 0.0
    %1500 = vmatpush1.msra.mxu0 %v1116
    %1501 = vmatprep.subr.mxu0 0.0
    %1502 = vmatpush1.msra.mxu0 %v1115
    %1503 = vmatprep.subr.mxu0 0.0
    %1504 = vmatpush1.msra.mxu0 %v1114
    %1505 = vmatprep.subr.mxu0 0.0
    %1506 = vmatpush2.msra.mxu0 0.0
    %1507 = vmatprep.subr.mxu0 0.0
    %1508 = vmatpush2.msra.mxu0 0.0
    %1509 = vmatprep.subr.mxu0 0.0
    %1510 = vmatpush2.msra.mxu0 0.0
    %1511 = vmatprep.subr.mxu0 0.0
    %1512 = vmatpush2.msra.mxu0 0.0
    %1513 = vmatprep.subr.mxu0 0.0
    %1514 = vmatpush2.msra.mxu0 0.0
    %1515 = vmatprep.subr.mxu0 0.0
    %1516 = vmatpush2.msra.mxu0 0.0
    %1517 = vmatprep.subr.mxu0 0.0
    %1518 = vmatpush2.msra.mxu0 0.0
    %1519 = vmatprep.subr.mxu0 0.0
    %1520 = vmatpush2.msra.mxu0 0.0
    %1521 = vmatprep.subr.mxu0 0.0
    %1522 = vmatpush2.msra.mxu0 0.0
    %1523 = vmatprep.subr.mxu0 0.0
    %1524 = vmatpush2.msra.mxu0 0.0
    %1525 = vmatprep.subr.mxu0 0.0
    %1526 = vmatpush2.msra.mxu0 0.0
    %1527 = vmatprep.subr.mxu0 0.0
    %1528 = vmatpush2.msra.mxu0 0.0
    %1529 = vmatprep.subr.mxu0 0.0
    %1530 = vmatpush2.msra.mxu0 0.0
    %1531 = vmatprep.subr.mxu0 0.0
    %1532 = vmatpush2.msra.mxu0 0.0
    %1533 = vmatprep.subr.mxu0 0.0
    %1534 = vmatpush2.msra.mxu0 0.0
    %1535 = vmatprep.subr.mxu0 0.0
    %1536 = vmatpush2.msra.mxu0 0.0
    %1537 = vmatprep.mubr.f32.mxu0 0.0
    %1538 = vmatmul.mubr.f32.gmra.mxu0 %v1471
    %v1539 = vpop.f32.mrf.mxu0
    %v1540 = vadd.f32 0.0, %v1539
    %v1541 = vpop.f32.mrf.mxu0
    %1542 = vdwg.mxu0
    %v1543 = vadd.f32 %v1467, %v1540
    %v1544 = vxor.u32 %v1543, 2147483648
    %v1545 = vmul.f32 %v1544, 1.442695
    %v1546 = vpow.pop %v1545
    %v1547 = vadd.f32 %v1546, 1.0
    %v1548 = vrcp.pop %v1547
    %v1549 = vmul.f32 1.0, %v1548
    %v1550 = vtanh.pop %v1543
    %v1551 = vmul.f32 %v1549, %v1460
    %1553 = vrot.lane.b32.xlu0 %v1550, 64
    %v1554 = vpop.permute.xlu0 %1553
    %v1556 = vmul.f32 %v1549, %v1554
    %1558 = vrot.lane.b32.xlu0 %v1556, 32
    %v1559 = vpop.permute.xlu0 %1558
    %v1561 = vadd.f32 %v1551, %v1559
    %v1562 = vtanh.pop %v1561
    %1564 = vrot.lane.b32.xlu0 %v1562, 64
    %v1565 = vpop.permute.xlu0 %1564
    %v1567 = vmul.f32 %v1549, %v1565
    %v1568 = vld [vmem:[#allocation2 + $0x18] sm:$0xff]
    %1570 = vrot.lane.b32.xlu0 %v1567, 32
    %v1571 = vpop.permute.xlu0 %1570
    %v1572 = vsel %vm264, %v1571, 0
    %1574 = vmatprep.subr.mxu0 0.0
    %1575 = vmatpush1.msra.mxu0 0.0
    %1576 = vmatprep.subr.mxu0 0.0
    %1577 = vmatpush1.msra.mxu0 0.0
    %1578 = vmatprep.subr.mxu0 0.0
    %1579 = vmatpush1.msra.mxu0 0.0
    %1580 = vmatprep.subr.mxu0 0.0
    %1581 = vmatpush1.msra.mxu0 0.0
    %1582 = vmatprep.subr.mxu0 0.0
    %1583 = vmatpush1.msra.mxu0 0.0
    %1584 = vmatprep.subr.mxu0 0.0
    %1585 = vmatpush1.msra.mxu0 0.0
    %1586 = vmatprep.subr.mxu0 0.0
    %1587 = vmatpush1.msra.mxu0 0.0
    %1588 = vmatprep.subr.mxu0 0.0
    %1589 = vmatpush1.msra.mxu0 0.0
    %1590 = vmatprep.subr.mxu0 0.0
    %1591 = vmatpush1.msra.mxu0 0.0
    %1592 = vmatprep.subr.mxu0 0.0
    %1593 = vmatpush1.msra.mxu0 0.0
    %1594 = vmatprep.subr.mxu0 0.0
    %1595 = vmatpush1.msra.mxu0 0.0
    %1596 = vmatprep.subr.mxu0 0.0
    %1597 = vmatpush1.msra.mxu0 0.0
    %1598 = vmatprep.subr.mxu0 0.0
    %1599 = vmatpush1.msra.mxu0 %v1117
    %1600 = vmatprep.subr.mxu0 0.0
    %1601 = vmatpush1.msra.mxu0 %v1116
    %1602 = vmatprep.subr.mxu0 0.0
    %1603 = vmatpush1.msra.mxu0 %v1115
    %1604 = vmatprep.subr.mxu0 0.0
    %1605 = vmatpush1.msra.mxu0 %v1114
    %1606 = vmatprep.subr.mxu0 0.0
    %1607 = vmatpush2.msra.mxu0 0.0
    %1608 = vmatprep.subr.mxu0 0.0
    %1609 = vmatpush2.msra.mxu0 0.0
    %1610 = vmatprep.subr.mxu0 0.0
    %1611 = vmatpush2.msra.mxu0 0.0
    %1612 = vmatprep.subr.mxu0 0.0
    %1613 = vmatpush2.msra.mxu0 0.0
    %1614 = vmatprep.subr.mxu0 0.0
    %1615 = vmatpush2.msra.mxu0 0.0
    %1616 = vmatprep.subr.mxu0 0.0
    %1617 = vmatpush2.msra.mxu0 0.0
    %1618 = vmatprep.subr.mxu0 0.0
    %1619 = vmatpush2.msra.mxu0 0.0
    %1620 = vmatprep.subr.mxu0 0.0
    %1621 = vmatpush2.msra.mxu0 0.0
    %1622 = vmatprep.subr.mxu0 0.0
    %1623 = vmatpush2.msra.mxu0 0.0
    %1624 = vmatprep.subr.mxu0 0.0
    %1625 = vmatpush2.msra.mxu0 0.0
    %1626 = vmatprep.subr.mxu0 0.0
    %1627 = vmatpush2.msra.mxu0 0.0
    %1628 = vmatprep.subr.mxu0 0.0
    %1629 = vmatpush2.msra.mxu0 0.0
    %1630 = vmatprep.subr.mxu0 0.0
    %1631 = vmatpush2.msra.mxu0 0.0
    %1632 = vmatprep.subr.mxu0 0.0
    %1633 = vmatpush2.msra.mxu0 0.0
    %1634 = vmatprep.subr.mxu0 0.0
    %1635 = vmatpush2.msra.mxu0 0.0
    %1636 = vmatprep.subr.mxu0 0.0
    %1637 = vmatpush2.msra.mxu0 0.0
    %1638 = vmatprep.mubr.f32.mxu0 0.0
    %1639 = vmatmul.mubr.f32.gmra.mxu0 %v1572
    %v1640 = vpop.f32.mrf.mxu0
    %v1641 = vadd.f32 0.0, %v1640
    %v1642 = vpop.f32.mrf.mxu0
    %1643 = vdwg.mxu0
    %v1644 = vadd.f32 %v1568, %v1641
    %v1645 = vxor.u32 %v1644, 2147483648
    %v1646 = vmul.f32 %v1645, 1.442695
    %v1647 = vpow.pop %v1646
    %v1648 = vadd.f32 %v1647, 1.0
    %v1649 = vrcp.pop %v1648
    %v1650 = vmul.f32 1.0, %v1649
    %v1651 = vtanh.pop %v1644
    %v1652 = vmul.f32 %v1650, %v1561
    %1654 = vrot.lane.b32.xlu0 %v1651, 64
    %v1655 = vpop.permute.xlu0 %1654
    %v1657 = vmul.f32 %v1650, %v1655
    %1659 = vrot.lane.b32.xlu0 %v1657, 32
    %v1660 = vpop.permute.xlu0 %1659
    %v1662 = vadd.f32 %v1652, %v1660
    %v1663 = vtanh.pop %v1662
    %1665 = vrot.lane.b32.xlu0 %v1663, 64
    %v1666 = vpop.permute.xlu0 %1665
    %v1668 = vmul.f32 %v1650, %v1666
    %v1669 = vld [vmem:[#allocation2 + $0x20] sm:$0xff]
    %1671 = vrot.lane.b32.xlu0 %v1668, 32
    %v1672 = vpop.permute.xlu0 %1671
    %v1673 = vsel %vm264, %v1672, 0
    %1675 = vmatprep.subr.mxu0 0.0
    %1676 = vmatpush1.msra.mxu0 0.0
    %1677 = vmatprep.subr.mxu0 0.0
    %1678 = vmatpush1.msra.mxu0 0.0
    %1679 = vmatprep.subr.mxu0 0.0
    %1680 = vmatpush1.msra.mxu0 0.0
    %1681 = vmatprep.subr.mxu0 0.0
    %1682 = vmatpush1.msra.mxu0 0.0
    %1683 = vmatprep.subr.mxu0 0.0
    %1684 = vmatpush1.msra.mxu0 0.0
    %1685 = vmatprep.subr.mxu0 0.0
    %1686 = vmatpush1.msra.mxu0 0.0
    %1687 = vmatprep.subr.mxu0 0.0
    %1688 = vmatpush1.msra.mxu0 0.0
    %1689 = vmatprep.subr.mxu0 0.0
    %1690 = vmatpush1.msra.mxu0 0.0
    %1691 = vmatprep.subr.mxu0 0.0
    %1692 = vmatpush1.msra.mxu0 0.0
    %1693 = vmatprep.subr.mxu0 0.0
    %1694 = vmatpush1.msra.mxu0 0.0
    %1695 = vmatprep.subr.mxu0 0.0
    %1696 = vmatpush1.msra.mxu0 0.0
    %1697 = vmatprep.subr.mxu0 0.0
    %1698 = vmatpush1.msra.mxu0 0.0
    %1699 = vmatprep.subr.mxu0 0.0
    %1700 = vmatpush1.msra.mxu0 %v1117
    %1701 = vmatprep.subr.mxu0 0.0
    %1702 = vmatpush1.msra.mxu0 %v1116
    %1703 = vmatprep.subr.mxu0 0.0
    %1704 = vmatpush1.msra.mxu0 %v1115
    %1705 = vmatprep.subr.mxu0 0.0
    %1706 = vmatpush1.msra.mxu0 %v1114
    %1707 = vmatprep.subr.mxu0 0.0
    %1708 = vmatpush2.msra.mxu0 0.0
    %1709 = vmatprep.subr.mxu0 0.0
    %1710 = vmatpush2.msra.mxu0 0.0
    %1711 = vmatprep.subr.mxu0 0.0
    %1712 = vmatpush2.msra.mxu0 0.0
    %1713 = vmatprep.subr.mxu0 0.0
    %1714 = vmatpush2.msra.mxu0 0.0
    %1715 = vmatprep.subr.mxu0 0.0
    %1716 = vmatpush2.msra.mxu0 0.0
    %1717 = vmatprep.subr.mxu0 0.0
    %1718 = vmatpush2.msra.mxu0 0.0
    %1719 = vmatprep.subr.mxu0 0.0
    %1720 = vmatpush2.msra.mxu0 0.0
    %1721 = vmatprep.subr.mxu0 0.0
    %1722 = vmatpush2.msra.mxu0 0.0
    %1723 = vmatprep.subr.mxu0 0.0
    %1724 = vmatpush2.msra.mxu0 0.0
    %1725 = vmatprep.subr.mxu0 0.0
    %1726 = vmatpush2.msra.mxu0 0.0
    %1727 = vmatprep.subr.mxu0 0.0
    %1728 = vmatpush2.msra.mxu0 0.0
    %1729 = vmatprep.subr.mxu0 0.0
    %1730 = vmatpush2.msra.mxu0 0.0
    %1731 = vmatprep.subr.mxu0 0.0
    %1732 = vmatpush2.msra.mxu0 0.0
    %1733 = vmatprep.subr.mxu0 0.0
    %1734 = vmatpush2.msra.mxu0 0.0
    %1735 = vmatprep.subr.mxu0 0.0
    %1736 = vmatpush2.msra.mxu0 0.0
    %1737 = vmatprep.subr.mxu0 0.0
    %1738 = vmatpush2.msra.mxu0 0.0
    %1739 = vmatprep.mubr.f32.mxu0 0.0
    %1740 = vmatmul.mubr.f32.gmra.mxu0 %v1673
    %v1741 = vpop.f32.mrf.mxu0
    %v1742 = vadd.f32 0.0, %v1741
    %v1743 = vpop.f32.mrf.mxu0
    %1744 = vdwg.mxu0
    %v1745 = vadd.f32 %v1669, %v1742
    %v1746 = vxor.u32 %v1745, 2147483648
    %v1747 = vmul.f32 %v1746, 1.442695
    %v1748 = vpow.pop %v1747
    %v1749 = vadd.f32 %v1748, 1.0
    %v1750 = vrcp.pop %v1749
    %v1751 = vmul.f32 1.0, %v1750
    %v1752 = vtanh.pop %v1745
    %v1753 = vmul.f32 %v1751, %v1662
    %1755 = vrot.lane.b32.xlu0 %v1752, 64
    %v1756 = vpop.permute.xlu0 %1755
    %v1758 = vmul.f32 %v1751, %v1756
    %1760 = vrot.lane.b32.xlu0 %v1758, 32
    %v1761 = vpop.permute.xlu0 %1760
    %v1763 = vadd.f32 %v1753, %v1761
    %v1764 = vtanh.pop %v1763
    %1766 = vrot.lane.b32.xlu0 %v1764, 64
    %v1767 = vpop.permute.xlu0 %1766
    %v1769 = vmul.f32 %v1751, %v1767
    %v1770 = vld [vmem:[#allocation2 + $0x28] sm:$0xff]
    %1772 = vrot.lane.b32.xlu0 %v1769, 32
    %v1773 = vpop.permute.xlu0 %1772
    %v1774 = vsel %vm264, %v1773, 0
    %1776 = vmatprep.subr.mxu0 0.0
    %1777 = vmatpush1.msra.mxu0 0.0
    %1778 = vmatprep.subr.mxu0 0.0
    %1779 = vmatpush1.msra.mxu0 0.0
    %1780 = vmatprep.subr.mxu0 0.0
    %1781 = vmatpush1.msra.mxu0 0.0
    %1782 = vmatprep.subr.mxu0 0.0
    %1783 = vmatpush1.msra.mxu0 0.0
    %1784 = vmatprep.subr.mxu0 0.0
    %1785 = vmatpush1.msra.mxu0 0.0
    %1786 = vmatprep.subr.mxu0 0.0
    %1787 = vmatpush1.msra.mxu0 0.0
    %1788 = vmatprep.subr.mxu0 0.0
    %1789 = vmatpush1.msra.mxu0 0.0
    %1790 = vmatprep.subr.mxu0 0.0
    %1791 = vmatpush1.msra.mxu0 0.0
    %1792 = vmatprep.subr.mxu0 0.0
    %1793 = vmatpush1.msra.mxu0 0.0
    %1794 = vmatprep.subr.mxu0 0.0
    %1795 = vmatpush1.msra.mxu0 0.0
    %1796 = vmatprep.subr.mxu0 0.0
    %1797 = vmatpush1.msra.mxu0 0.0
    %1798 = vmatprep.subr.mxu0 0.0
    %1799 = vmatpush1.msra.mxu0 0.0
    %1800 = vmatprep.subr.mxu0 0.0
    %1801 = vmatpush1.msra.mxu0 %v1117
    %1802 = vmatprep.subr.mxu0 0.0
    %1803 = vmatpush1.msra.mxu0 %v1116
    %1804 = vmatprep.subr.mxu0 0.0
    %1805 = vmatpush1.msra.mxu0 %v1115
    %1806 = vmatprep.subr.mxu0 0.0
    %1807 = vmatpush1.msra.mxu0 %v1114
    %1808 = vmatprep.subr.mxu0 0.0
    %1809 = vmatpush2.msra.mxu0 0.0
    %1810 = vmatprep.subr.mxu0 0.0
    %1811 = vmatpush2.msra.mxu0 0.0
    %1812 = vmatprep.subr.mxu0 0.0
    %1813 = vmatpush2.msra.mxu0 0.0
    %1814 = vmatprep.subr.mxu0 0.0
    %1815 = vmatpush2.msra.mxu0 0.0
    %1816 = vmatprep.subr.mxu0 0.0
    %1817 = vmatpush2.msra.mxu0 0.0
    %1818 = vmatprep.subr.mxu0 0.0
    %1819 = vmatpush2.msra.mxu0 0.0
    %1820 = vmatprep.subr.mxu0 0.0
    %1821 = vmatpush2.msra.mxu0 0.0
    %1822 = vmatprep.subr.mxu0 0.0
    %1823 = vmatpush2.msra.mxu0 0.0
    %1824 = vmatprep.subr.mxu0 0.0
    %1825 = vmatpush2.msra.mxu0 0.0
    %1826 = vmatprep.subr.mxu0 0.0
    %1827 = vmatpush2.msra.mxu0 0.0
    %1828 = vmatprep.subr.mxu0 0.0
    %1829 = vmatpush2.msra.mxu0 0.0
    %1830 = vmatprep.subr.mxu0 0.0
    %1831 = vmatpush2.msra.mxu0 0.0
    %1832 = vmatprep.subr.mxu0 0.0
    %1833 = vmatpush2.msra.mxu0 0.0
    %1834 = vmatprep.subr.mxu0 0.0
    %1835 = vmatpush2.msra.mxu0 0.0
    %1836 = vmatprep.subr.mxu0 0.0
    %1837 = vmatpush2.msra.mxu0 0.0
    %1838 = vmatprep.subr.mxu0 0.0
    %1839 = vmatpush2.msra.mxu0 0.0
    %1840 = vmatprep.mubr.f32.mxu0 0.0
    %1841 = vmatmul.mubr.f32.gmra.mxu0 %v1774
    %v1842 = vpop.f32.mrf.mxu0
    %v1843 = vadd.f32 0.0, %v1842
    %v1844 = vpop.f32.mrf.mxu0
    %1845 = vdwg.mxu0
    %v1846 = vadd.f32 %v1770, %v1843
    %v1847 = vxor.u32 %v1846, 2147483648
    %v1848 = vmul.f32 %v1847, 1.442695
    %v1849 = vpow.pop %v1848
    %v1850 = vadd.f32 %v1849, 1.0
    %v1851 = vrcp.pop %v1850
    %v1852 = vmul.f32 1.0, %v1851
    %v1853 = vtanh.pop %v1846
    %v1854 = vmul.f32 %v1852, %v1763
    %1856 = vrot.lane.b32.xlu0 %v1853, 64
    %v1857 = vpop.permute.xlu0 %1856
    %v1859 = vmul.f32 %v1852, %v1857
    %1861 = vrot.lane.b32.xlu0 %v1859, 32
    %v1862 = vpop.permute.xlu0 %1861
    %v1864 = vadd.f32 %v1854, %v1862
    %v1865 = vtanh.pop %v1864
    %1867 = vrot.lane.b32.xlu0 %v1865, 64
    %v1868 = vpop.permute.xlu0 %1867
    %v1870 = vmul.f32 %v1852, %v1868
    %v1871 = vld [vmem:[#allocation2 + $0x30] sm:$0xff]
    %1873 = vrot.lane.b32.xlu0 %v1870, 32
    %v1874 = vpop.permute.xlu0 %1873
    %v1875 = vsel %vm264, %v1874, 0
    %1877 = vmatprep.subr.mxu0 0.0
    %1878 = vmatpush1.msra.mxu0 0.0
    %1879 = vmatprep.subr.mxu0 0.0
    %1880 = vmatpush1.msra.mxu0 0.0
    %1881 = vmatprep.subr.mxu0 0.0
    %1882 = vmatpush1.msra.mxu0 0.0
    %1883 = vmatprep.subr.mxu0 0.0
    %1884 = vmatpush1.msra.mxu0 0.0
    %1885 = vmatprep.subr.mxu0 0.0
    %1886 = vmatpush1.msra.mxu0 0.0
    %1887 = vmatprep.subr.mxu0 0.0
    %1888 = vmatpush1.msra.mxu0 0.0
    %1889 = vmatprep.subr.mxu0 0.0
    %1890 = vmatpush1.msra.mxu0 0.0
    %1891 = vmatprep.subr.mxu0 0.0
    %1892 = vmatpush1.msra.mxu0 0.0
    %1893 = vmatprep.subr.mxu0 0.0
    %1894 = vmatpush1.msra.mxu0 0.0
    %1895 = vmatprep.subr.mxu0 0.0
    %1896 = vmatpush1.msra.mxu0 0.0
    %1897 = vmatprep.subr.mxu0 0.0
    %1898 = vmatpush1.msra.mxu0 0.0
    %1899 = vmatprep.subr.mxu0 0.0
    %1900 = vmatpush1.msra.mxu0 0.0
    %1901 = vmatprep.subr.mxu0 0.0
    %1902 = vmatpush1.msra.mxu0 %v1117
    %1903 = vmatprep.subr.mxu0 0.0
    %1904 = vmatpush1.msra.mxu0 %v1116
    %1905 = vmatprep.subr.mxu0 0.0
    %1906 = vmatpush1.msra.mxu0 %v1115
    %1907 = vmatprep.subr.mxu0 0.0
    %1908 = vmatpush1.msra.mxu0 %v1114
    %1909 = vmatprep.subr.mxu0 0.0
    %1910 = vmatpush2.msra.mxu0 0.0
    %1911 = vmatprep.subr.mxu0 0.0
    %1912 = vmatpush2.msra.mxu0 0.0
    %1913 = vmatprep.subr.mxu0 0.0
    %1914 = vmatpush2.msra.mxu0 0.0
    %1915 = vmatprep.subr.mxu0 0.0
    %1916 = vmatpush2.msra.mxu0 0.0
    %1917 = vmatprep.subr.mxu0 0.0
    %1918 = vmatpush2.msra.mxu0 0.0
    %1919 = vmatprep.subr.mxu0 0.0
    %1920 = vmatpush2.msra.mxu0 0.0
    %1921 = vmatprep.subr.mxu0 0.0
    %1922 = vmatpush2.msra.mxu0 0.0
    %1923 = vmatprep.subr.mxu0 0.0
    %1924 = vmatpush2.msra.mxu0 0.0
    %1925 = vmatprep.subr.mxu0 0.0
    %1926 = vmatpush2.msra.mxu0 0.0
    %1927 = vmatprep.subr.mxu0 0.0
    %1928 = vmatpush2.msra.mxu0 0.0
    %1929 = vmatprep.subr.mxu0 0.0
    %1930 = vmatpush2.msra.mxu0 0.0
    %1931 = vmatprep.subr.mxu0 0.0
    %1932 = vmatpush2.msra.mxu0 0.0
    %1933 = vmatprep.subr.mxu0 0.0
    %1934 = vmatpush2.msra.mxu0 0.0
    %1935 = vmatprep.subr.mxu0 0.0
    %1936 = vmatpush2.msra.mxu0 0.0
    %1937 = vmatprep.subr.mxu0 0.0
    %1938 = vmatpush2.msra.mxu0 0.0
    %1939 = vmatprep.subr.mxu0 0.0
    %1940 = vmatpush2.msra.mxu0 0.0
    %1941 = vmatprep.mubr.f32.mxu0 0.0
    %1942 = vmatmul.mubr.f32.gmra.mxu0 %v1875
    %v1943 = vpop.f32.mrf.mxu0
    %v1944 = vadd.f32 0.0, %v1943
    %v1945 = vpop.f32.mrf.mxu0
    %1946 = vdwg.mxu0
    %v1947 = vadd.f32 %v1871, %v1944
    %v1948 = vxor.u32 %v1947, 2147483648
    %v1949 = vmul.f32 %v1948, 1.442695
    %v1950 = vpow.pop %v1949
    %v1951 = vadd.f32 %v1950, 1.0
    %v1952 = vrcp.pop %v1951
    %v1953 = vmul.f32 1.0, %v1952
    %v1954 = vtanh.pop %v1947
    %v1955 = vmul.f32 %v1953, %v1864
    %1957 = vrot.lane.b32.xlu0 %v1954, 64
    %v1958 = vpop.permute.xlu0 %1957
    %v1960 = vmul.f32 %v1953, %v1958
    %1962 = vrot.lane.b32.xlu0 %v1960, 32
    %v1963 = vpop.permute.xlu0 %1962
    %v1965 = vadd.f32 %v1955, %v1963
    %v1966 = vtanh.pop %v1965
    %1968 = vrot.lane.b32.xlu0 %v1966, 64
    %v1969 = vpop.permute.xlu0 %1968
    %v1971 = vmul.f32 %v1953, %v1969
    %v1972 = vld [vmem:[#allocation2 + $0x38] sm:$0xff]
    %1974 = vrot.lane.b32.xlu0 %v1971, 32
    %v1975 = vpop.permute.xlu0 %1974
    %v1976 = vsel %vm264, %v1975, 0
    %1978 = vmatprep.subr.mxu0 0.0
    %1979 = vmatpush1.msra.mxu0 0.0
    %1980 = vmatprep.subr.mxu0 0.0
    %1981 = vmatpush1.msra.mxu0 0.0
    %1982 = vmatprep.subr.mxu0 0.0
    %1983 = vmatpush1.msra.mxu0 0.0
    %1984 = vmatprep.subr.mxu0 0.0
    %1985 = vmatpush1.msra.mxu0 0.0
    %1986 = vmatprep.subr.mxu0 0.0
    %1987 = vmatpush1.msra.mxu0 0.0
    %1988 = vmatprep.subr.mxu0 0.0
    %1989 = vmatpush1.msra.mxu0 0.0
    %1990 = vmatprep.subr.mxu0 0.0
    %1991 = vmatpush1.msra.mxu0 0.0
    %1992 = vmatprep.subr.mxu0 0.0
    %1993 = vmatpush1.msra.mxu0 0.0
    %1994 = vmatprep.subr.mxu0 0.0
    %1995 = vmatpush1.msra.mxu0 0.0
    %1996 = vmatprep.subr.mxu0 0.0
    %1997 = vmatpush1.msra.mxu0 0.0
    %1998 = vmatprep.subr.mxu0 0.0
    %1999 = vmatpush1.msra.mxu0 0.0
    %2000 = vmatprep.subr.mxu0 0.0
    %2001 = vmatpush1.msra.mxu0 0.0
    %2002 = vmatprep.subr.mxu0 0.0
    %2003 = vmatpush1.msra.mxu0 %v1117
    %2004 = vmatprep.subr.mxu0 0.0
    %2005 = vmatpush1.msra.mxu0 %v1116
    %2006 = vmatprep.subr.mxu0 0.0
    %2007 = vmatpush1.msra.mxu0 %v1115
    %2008 = vmatprep.subr.mxu0 0.0
    %2009 = vmatpush1.msra.mxu0 %v1114
    %2010 = vmatprep.subr.mxu0 0.0
    %2011 = vmatpush2.msra.mxu0 0.0
    %2012 = vmatprep.subr.mxu0 0.0
    %2013 = vmatpush2.msra.mxu0 0.0
    %2014 = vmatprep.subr.mxu0 0.0
    %2015 = vmatpush2.msra.mxu0 0.0
    %2016 = vmatprep.subr.mxu0 0.0
    %2017 = vmatpush2.msra.mxu0 0.0
    %2018 = vmatprep.subr.mxu0 0.0
    %2019 = vmatpush2.msra.mxu0 0.0
    %2020 = vmatprep.subr.mxu0 0.0
    %2021 = vmatpush2.msra.mxu0 0.0
    %2022 = vmatprep.subr.mxu0 0.0
    %2023 = vmatpush2.msra.mxu0 0.0
    %2024 = vmatprep.subr.mxu0 0.0
    %2025 = vmatpush2.msra.mxu0 0.0
    %2026 = vmatprep.subr.mxu0 0.0
    %2027 = vmatpush2.msra.mxu0 0.0
    %2028 = vmatprep.subr.mxu0 0.0
    %2029 = vmatpush2.msra.mxu0 0.0
    %2030 = vmatprep.subr.mxu0 0.0
    %2031 = vmatpush2.msra.mxu0 0.0
    %2032 = vmatprep.subr.mxu0 0.0
    %2033 = vmatpush2.msra.mxu0 0.0
    %2034 = vmatprep.subr.mxu0 0.0
    %2035 = vmatpush2.msra.mxu0 0.0
    %2036 = vmatprep.subr.mxu0 0.0
    %2037 = vmatpush2.msra.mxu0 0.0
    %2038 = vmatprep.subr.mxu0 0.0
    %2039 = vmatpush2.msra.mxu0 0.0
    %2040 = vmatprep.subr.mxu0 0.0
    %2041 = vmatpush2.msra.mxu0 0.0
    %2042 = vmatprep.mubr.f32.mxu0 0.0
    %2043 = vmatmul.mubr.f32.gmra.mxu0 %v1976
    %v2044 = vpop.f32.mrf.mxu0
    %v2045 = vadd.f32 0.0, %v2044
    %v2046 = vpop.f32.mrf.mxu0
    %2047 = vdwg.mxu0
    %v2048 = vadd.f32 %v1972, %v2045
    %v2049 = vxor.u32 %v2048, 2147483648
    %v2050 = vmul.f32 %v2049, 1.442695
    %v2051 = vpow.pop %v2050
    %v2052 = vadd.f32 %v2051, 1.0
    %v2053 = vrcp.pop %v2052
    %v2054 = vmul.f32 1.0, %v2053
    %v2055 = vtanh.pop %v2048
    %v2056 = vmul.f32 %v2054, %v1965
    %2058 = vrot.lane.b32.xlu0 %v2055, 64
    %v2059 = vpop.permute.xlu0 %2058
    %v2061 = vmul.f32 %v2054, %v2059
    %2063 = vrot.lane.b32.xlu0 %v2061, 32
    %v2064 = vpop.permute.xlu0 %2063
    %v2066 = vadd.f32 %v2056, %v2064
    %v2067 = vtanh.pop %v2066
    %2069 = vrot.lane.b32.xlu0 %v2067, 64
    %v2070 = vpop.permute.xlu0 %2069
    %v2072 = vmul.f32 %v2054, %v2070
    %v2073 = vld [vmem:[%s7] sm:$0x1]
    %v2075 = vlaneseq
    %v2076 = vshrl.u32 %v2075, 7
    %v2077 = vsub.s32 0, %v2076
    %v2078 = vrot.slane %v2073, %v2077
    %2079 = vrot.lane.b32.xlu0 %v2078, 96
    %v2080 = vpop.permute.xlu0 %2079
    %v2082 = vmul.f32 %v2072, %v2080
    %2084 = vrot.lane.b32.xlu0 %v2082, 32
    %v2085 = vpop.permute.xlu0 %2084
    %v2087 = vsel %vm264, %v2085, 0.0
    %2088 = vadd.xlane.f32.xlu0 %v2087
    %v2089 = vpop.xlane.xlu0 %2088
    %v2090 = vld [vmem:[#allocation4] sm:$0x1]
    %v2092 = vlaneseq
    %v2093 = vshrl.u32 %v2092, 7
    %v2094 = vsub.s32 0, %v2093
    %v2095 = vrot.slane %v2090, %v2094
    %v2097 = vadd.f32 %v2089, %v2095
    %vm2098 = vcmask 7168
    %2099 = vst.msk [vmem:[%s9] sm:$0xff] %vm2098, %v2097
    // Predicated region
    $region58: #{lstm_pv_forward.1} parent=1 // pred_check
      _
    $region59: #{lstm_pv_forward.1} parent=1 // pred_check_branch
      %2101 = sbr.rel (0) target = $region61
    $region60: #{lstm_pv_forward.1} parent=1 // pred_region
      _
    $region61: #{lstm_pv_forward.1} parent=1 // pred_fallthru
      _
    // Predicated region
    $region62: #{lstm_pv_forward.1} parent=1 // pred_check
      _
    $region63: #{lstm_pv_forward.1} parent=1 // pred_check_branch
      %2103 = sbr.rel (0) target = $region65
    $region64: #{lstm_pv_forward.1} parent=1 // pred_region
      _
    $region65: #{lstm_pv_forward.1} parent=1 // pred_fallthru
      _
    %2104 = vsyncpa [#allocation6], 1
    %2105 = vsyncpa [#allocation8], 1
    %2106 = vsyncpa [#allocation11], 1

</llo_original>
